<compile_context>
chip_gen: v7x
topology: tpu7x:2x2x1
jax: 0.10.0
libtpu: 0.0.40
codegen_flags: <defaults>
</compile_context>

<pallas_src>
import functools

import jax
import jax.numpy as jnp
import numpy as np
from jax.experimental import pallas as pl
from jax.experimental.pallas import tpu as pltpu

# Below this channel count the MXU matmul (M = C) is starvation-bound, so the
# channel contraction is done with VPU broadcast-FMAs instead.
_MXU_MIN_CHANNELS = 16


def _residual_block_kernel(x_ref, w1_ref, b1_ref, w2_ref, b2_ref, mask_ref,
                           out_ref, *scratch, shifts, use_mxu):
    # x_ref/out_ref : (1, C, HW)  one image per grid step, lane-dense spatial axis
    # w*_ref        : (C, 9C)     shared im2col weight (bf16 on the MXU path)
    # b*_ref        : (C, 1)      f32
    # mask_ref      : (9, HW)     f32 0/1 border masks (centre tap never used)
    # scratch       : [(9C, HW) bf16 im2col patch buffer]   (MXU path only)
    C, HW = x_ref.shape[1], x_ref.shape[2]
    x = x_ref[0].astype(jnp.float32)                     # (C, HW)
    masks = mask_ref[...]                                # (9, HW), resident
    w1 = w1_ref[...]
    w2 = w2_ref[...]
    b1 = b1_ref[...].astype(jnp.float32)
    b2 = b2_ref[...].astype(jnp.float32)

    def tap(a, t, s):
        # Shifted + masked 3x3 tap: lane roll on the (otherwise idle) XLU plus a
        # 0/1 mask multiply realizes the zero "same" padding.  The centre tap
        # (t == 4) needs neither a roll nor a mask.
        if t == 4:
            return a
        return pltpu.roll(a, shift=s, axis=1) * masks[t:t + 1, :]

    if use_mxu:
        patch_ref = scratch[0]                           # reused by both convs

        def conv3x3(a, w, b):
            for t, s in enumerate(shifts):
                patch_ref[pl.ds(t * C, C), :] = tap(a, t, s).astype(patch_ref.dtype)
            # Single fused MXU matmul per conv: bf16 operands, f32 accumulation.
            return jnp.dot(w, patch_ref[...],
                           preferred_element_type=jnp.float32) + b
    else:

        def conv3x3(a, w, b):
            # Tiny C: 9*C broadcast FMAs on the VPU (f32 throughout; v5e-safe).
            acc = jnp.zeros((C, HW), jnp.float32) + b
            for t, s in enumerate(shifts):
                r = tap(a, t, s)                                      # (C, HW)
                wt = w[:, t * C:(t + 1) * C].astype(jnp.float32)      # (C, C)
                for ci in range(C):
                    acc = acc + wt[:, ci:ci + 1] * r[ci:ci + 1, :]
            return acc

    o1 = conv3x3(jnp.maximum(x, 0.0), w1, b1)            # conv1(relu(x))
    o2 = conv3x3(jnp.maximum(o1, 0.0), w2, b2)           # conv2(relu(o1))
    out_ref[0] = (o2 + x).astype(out_ref.dtype)          # residual add


def _conv_weight_matrix(w_oihw, dtype):
    """PyTorch OIHW (C, C, 3, 3) -> (C, 9C) with column t*C + ci = w[:, ci, ky, kx],
    t = ky*3 + kx, matching the kernel's patch-row ordering (shared across images)."""
    C = w_oihw.shape[0]
    return jnp.transpose(w_oihw, (0, 2, 3, 1)).reshape(C, 9 * C).astype(dtype)


def _tap_shifts_and_masks(H, W):
    """Lane-roll shifts and 0/1 border masks for the 9 taps of a 3x3 'same' conv."""
    HW = H * W
    p = np.arange(HW)
    yy, xx = p // W, p % W
    shifts, masks = [], []
    for dy in (-1, 0, 1):
        for dx in (-1, 0, 1):
            shifts.append(int((-(dy * W + dx)) % HW))
            masks.append(((yy + dy >= 0) & (yy + dy < H) &
                          (xx + dx >= 0) & (xx + dx < W)).astype(np.float32))
    return tuple(shifts), jnp.asarray(np.stack(masks))    # (9, HW)


def residual_block(x_nchw, w1_oihw, b1, w2_oihw, b2):
    """x_nchw: (N, C, H, W); conv weights in PyTorch OIHW layout; biases (C,)."""
    N, C, H, W = x_nchw.shape
    HW = H * W
    use_mxu = C >= _MXU_MIN_CHANNELS
    w_dtype = jnp.bfloat16 if use_mxu else jnp.float32

    x3 = x_nchw.reshape(N, C, HW)                         # NCHW is already contiguous this way
    w1m = _conv_weight_matrix(w1_oihw, w_dtype)           # (C, 9C), shared, VMEM-resident
    w2m = _conv_weight_matrix(w2_oihw, w_dtype)
    b1m = b1.reshape(C, 1).astype(jnp.float32)
    b2m = b2.reshape(C, 1).astype(jnp.float32)
    shifts, masks = _tap_shifts_and_masks(H, W)

    kernel = functools.partial(_residual_block_kernel, shifts=shifts, use_mxu=use_mxu)
    scratch = [pltpu.VMEM((9 * C, HW), jnp.bfloat16)] if use_mxu else []

    # VMEM budget: double-buffered per-image x/out tiles + resident weights/masks
    # (+ the bf16 im2col patch scratch on the MXU path), with ~2x headroom.
    w_bytes = 2 if use_mxu else 4
    est = (4 * C * HW * 4                      # x + out tiles, double-buffered, f32
           + 2 * (2 * C * 9 * C * w_bytes)     # two weight matrices
           + 2 * (2 * C * 4)                   # two biases
           + 2 * 9 * HW * 4                    # border masks
           + (9 * C * HW * 2 if use_mxu else 0))
    vmem_limit = int(max(2 * est, 8 << 20))    # fits every generation's scoped limit

    const2 = lambda n: (0, 0)
    per_image = pl.BlockSpec((1, C, HW), lambda n: (n, 0, 0))

    out = pl.pallas_call(
        kernel,
        out_shape=jax.ShapeDtypeStruct((N, C, HW), x_nchw.dtype),
        grid_spec=pltpu.PrefetchScalarGridSpec(
            num_scalar_prefetch=0,
            grid=(N,),
            in_specs=[
                per_image,                                 # x
                pl.BlockSpec((C, 9 * C), const2),          # w1 (resident)
                pl.BlockSpec((C, 1), const2),              # b1
                pl.BlockSpec((C, 9 * C), const2),          # w2 (resident)
                pl.BlockSpec((C, 1), const2),              # b2
                pl.BlockSpec((9, HW), const2),             # border masks (resident)
            ],
            out_specs=per_image,
            scratch_shapes=scratch,
        ),
        compiler_params=pltpu.CompilerParams(
            dimension_semantics=("parallel",),             # shard images across v7x's 2 TCs
            vmem_limit_bytes=vmem_limit),
    )(x3, w1m, b1m, w2m, b2m, masks)

    return out.reshape(N, C, H, W)


def _reference(x, w1, b1, w2, b2):
    # Pure-JAX reference matching nn.Conv2d(3x3, stride 1, pad 1) semantics.
    def conv(inp, w, b):
        y = jax.lax.conv_general_dilated(
            inp, w, window_strides=(1, 1), padding=((1, 1), (1, 1)),
            dimension_numbers=("NCHW", "OIHW", "NCHW"),
            precision=jax.lax.Precision.HIGHEST)
        return y + b.reshape(1, -1, 1, 1)

    o = conv(jax.nn.relu(x), w1, b1)
    o = conv(jax.nn.relu(o), w2, b2)
    return o + x


if __name__ == "__main__":
    key = jax.random.PRNGKey(0)
    kx, kp, kx2, kp2 = jax.random.split(key, 4)

    def make_params(k, C):
        kw1, kb1, kw2, kb2 = jax.random.split(k, 4)
        bound = 1.0 / float(np.sqrt(C * 9))     # PyTorch-style uniform bounds
        w1 = jax.random.uniform(kw1, (C, C, 3, 3), jnp.float32, -bound, bound)
        b1 = jax.random.uniform(kb1, (C,), jnp.float32, -bound, bound)
        w2 = jax.random.uniform(kw2, (C, C, 3, 3), jnp.float32, -bound, bound)
        b2 = jax.random.uniform(kb2, (C,), jnp.float32, -bound, bound)
        return w1, b1, w2, b2

    # Primary (spec) shape: C=4 -> VPU broadcast-FMA path, f32 end-to-end.
    N, C, H, W = 2, 4, 16, 16
    x = jax.random.normal(kx, (N, C, H, W), jnp.float32)
    w1, b1, w2, b2 = make_params(kp, C)
    out = jax.block_until_ready(residual_block(x, w1, b1, w2, b2))
    np.testing.assert_allclose(np.asarray(out), np.asarray(_reference(x, w1, b1, w2, b2)),
                               rtol=1e-3, atol=1e-3)

    # IMPALA-like channel count: C=16 -> bf16 MXU im2col path (looser tolerance
    # absorbs the bf16 operand rounding; accumulation stays f32).
    C2 = 16
    x2 = jax.random.normal(kx2, (N, C2, H, W), jnp.float32)
    w1b, b1b, w2b, b2b = make_params(kp2, C2)
    out2 = jax.block_until_ready(residual_block(x2, w1b, b1b, w2b, b2b))
    np.testing.assert_allclose(np.asarray(out2), np.asarray(_reference(x2, w1b, b1b, w2b, b2b)),
                               rtol=3e-2, atol=3e-2)

    print("KERNEL_OK")
</pallas_src>

<mosaic_0001>
module attributes {stable_mosaic.version = 11 : i64} {
  func.func @_residual_block_kernel(%arg0: i32, %arg1: memref<1x4x256xf32, #tpu.memory_space<vmem>>, %arg2: memref<4x36xf32, #tpu.memory_space<vmem>>, %arg3: memref<4x1xf32, #tpu.memory_space<vmem>>, %arg4: memref<4x36xf32, #tpu.memory_space<vmem>>, %arg5: memref<4x1xf32, #tpu.memory_space<vmem>>, %arg6: memref<9x256xf32, #tpu.memory_space<vmem>>, %arg7: memref<1x4x256xf32, #tpu.memory_space<vmem>>) attributes {dimension_semantics = [#tpu.dimension_semantics<parallel>], iteration_bounds = array<i64: 2>, scalar_prefetch = 0 : i64, scratch_operands = 0 : i64, tpu.core_type = #tpu.core_type<tc>, window_params = [{transform_indices = @transform_0, window_bounds = array<i64: 1, 4, 256>}, {pipeline_mode = #tpu.pipeline_mode<synchronous>, transform_indices = @transform_1, window_bounds = array<i64: 4, 36>}, {pipeline_mode = #tpu.pipeline_mode<synchronous>, transform_indices = @transform_2, window_bounds = array<i64: 4, 1>}, {pipeline_mode = #tpu.pipeline_mode<synchronous>, transform_indices = @transform_3, window_bounds = array<i64: 4, 36>}, {pipeline_mode = #tpu.pipeline_mode<synchronous>, transform_indices = @transform_4, window_bounds = array<i64: 4, 1>}, {pipeline_mode = #tpu.pipeline_mode<synchronous>, transform_indices = @transform_5, window_bounds = array<i64: 9, 256>}, {transform_indices = @transform_6, window_bounds = array<i64: 1, 4, 256>}]} {
    %c0 = arith.constant 0 : index
    %c0_0 = arith.constant 0 : index
    %c0_1 = arith.constant 0 : index
    %0 = vector.load %arg1[%c0, %c0_0, %c0_1] : memref<1x4x256xf32, #tpu.memory_space<vmem>>, vector<1x4x256xf32>
    %1 = vector.shape_cast %0 : vector<1x4x256xf32> to vector<4x256xf32>
    %c0_2 = arith.constant 0 : index
    %c0_3 = arith.constant 0 : index
    %2 = vector.load %arg6[%c0_2, %c0_3] : memref<9x256xf32, #tpu.memory_space<vmem>>, vector<9x256xf32>
    %c0_4 = arith.constant 0 : index
    %c0_5 = arith.constant 0 : index
    %3 = vector.load %arg2[%c0_4, %c0_5] : memref<4x36xf32, #tpu.memory_space<vmem>>, vector<4x36xf32>
    %c0_6 = arith.constant 0 : index
    %c0_7 = arith.constant 0 : index
    %4 = vector.load %arg4[%c0_6, %c0_7] : memref<4x36xf32, #tpu.memory_space<vmem>>, vector<4x36xf32>
    %c0_8 = arith.constant 0 : index
    %c0_9 = arith.constant 0 : index
    %5 = vector.load %arg3[%c0_8, %c0_9] : memref<4x1xf32, #tpu.memory_space<vmem>>, vector<4x1xf32>
    %c0_10 = arith.constant 0 : index
    %c0_11 = arith.constant 0 : index
    %6 = vector.load %arg5[%c0_10, %c0_11] : memref<4x1xf32, #tpu.memory_space<vmem>>, vector<4x1xf32>
    %cst = arith.constant 0.000000e+00 : f32
    %7 = vector.broadcast %cst : f32 to vector<4x256xf32>
    %8 = arith.maximumf %1, %7 : vector<4x256xf32>
    %cst_12 = arith.constant 0.000000e+00 : f32
    %9 = vector.broadcast %cst_12 : f32 to vector<4x256xf32>
    %10 = vector.broadcast %5 : vector<4x1xf32> to vector<4x256xf32>
    %11 = arith.addf %9, %10 : vector<4x256xf32>
    %c17_i32 = arith.constant 17 : i32
    %12 = tpu.dynamic_rotate %8 by %c17_i32 dim 1 : vector<4x256xf32>, i32 -> vector<4x256xf32>
    %13 = vector.extract_strided_slice %2 {offsets = [0, 0], sizes = [1, 256], strides = [1, 1]} : vector<9x256xf32> to vector<1x256xf32>
    %14 = vector.broadcast %13 : vector<1x256xf32> to vector<4x256xf32>
    %15 = arith.mulf %12, %14 : vector<4x256xf32>
    %16 = vector.extract_strided_slice %3 {offsets = [0, 0], sizes = [4, 4], strides = [1, 1]} : vector<4x36xf32> to vector<4x4xf32>
    %17 = vector.extract_strided_slice %16 {offsets = [0, 0], sizes = [4, 1], strides = [1, 1]} : vector<4x4xf32> to vector<4x1xf32>
    %18 = vector.extract_strided_slice %15 {offsets = [0, 0], sizes = [1, 256], strides = [1, 1]} : vector<4x256xf32> to vector<1x256xf32>
    %19 = vector.broadcast %17 : vector<4x1xf32> to vector<4x256xf32>
    %20 = vector.broadcast %18 : vector<1x256xf32> to vector<4x256xf32>
    %21 = arith.mulf %19, %20 : vector<4x256xf32>
    %22 = arith.addf %11, %21 : vector<4x256xf32>
    %23 = vector.extract_strided_slice %16 {offsets = [0, 1], sizes = [4, 1], strides = [1, 1]} : vector<4x4xf32> to vector<4x1xf32>
    %24 = vector.extract_strided_slice %15 {offsets = [1, 0], sizes = [1, 256], strides = [1, 1]} : vector<4x256xf32> to vector<1x256xf32>
    %25 = vector.broadcast %23 : vector<4x1xf32> to vector<4x256xf32>
    %26 = vector.broadcast %24 : vector<1x256xf32> to vector<4x256xf32>
    %27 = arith.mulf %25, %26 : vector<4x256xf32>
    %28 = arith.addf %22, %27 : vector<4x256xf32>
    %29 = vector.extract_strided_slice %16 {offsets = [0, 2], sizes = [4, 1], strides = [1, 1]} : vector<4x4xf32> to vector<4x1xf32>
    %30 = vector.extract_strided_slice %15 {offsets = [2, 0], sizes = [1, 256], strides = [1, 1]} : vector<4x256xf32> to vector<1x256xf32>
    %31 = vector.broadcast %29 : vector<4x1xf32> to vector<4x256xf32>
    %32 = vector.broadcast %30 : vector<1x256xf32> to vector<4x256xf32>
    %33 = arith.mulf %31, %32 : vector<4x256xf32>
    %34 = arith.addf %28, %33 : vector<4x256xf32>
    %35 = vector.extract_strided_slice %16 {offsets = [0, 3], sizes = [4, 1], strides = [1, 1]} : vector<4x4xf32> to vector<4x1xf32>
    %36 = vector.extract_strided_slice %15 {offsets = [3, 0], sizes = [1, 256], strides = [1, 1]} : vector<4x256xf32> to vector<1x256xf32>
    %37 = vector.broadcast %35 : vector<4x1xf32> to vector<4x256xf32>
    %38 = vector.broadcast %36 : vector<1x256xf32> to vector<4x256xf32>
    %39 = arith.mulf %37, %38 : vector<4x256xf32>
    %40 = arith.addf %34, %39 : vector<4x256xf32>
    %c16_i32 = arith.constant 16 : i32
    %41 = tpu.dynamic_rotate %8 by %c16_i32 dim 1 : vector<4x256xf32>, i32 -> vector<4x256xf32>
    %42 = vector.extract_strided_slice %2 {offsets = [1, 0], sizes = [1, 256], strides = [1, 1]} : vector<9x256xf32> to vector<1x256xf32>
    %43 = vector.broadcast %42 : vector<1x256xf32> to vector<4x256xf32>
    %44 = arith.mulf %41, %43 : vector<4x256xf32>
    %45 = vector.extract_strided_slice %3 {offsets = [0, 4], sizes = [4, 4], strides = [1, 1]} : vector<4x36xf32> to vector<4x4xf32>
    %46 = vector.extract_strided_slice %45 {offsets = [0, 0], sizes = [4, 1], strides = [1, 1]} : vector<4x4xf32> to vector<4x1xf32>
    %47 = vector.extract_strided_slice %44 {offsets = [0, 0], sizes = [1, 256], strides = [1, 1]} : vector<4x256xf32> to vector<1x256xf32>
    %48 = vector.broadcast %46 : vector<4x1xf32> to vector<4x256xf32>
    %49 = vector.broadcast %47 : vector<1x256xf32> to vector<4x256xf32>
    %50 = arith.mulf %48, %49 : vector<4x256xf32>
    %51 = arith.addf %40, %50 : vector<4x256xf32>
    %52 = vector.extract_strided_slice %45 {offsets = [0, 1], sizes = [4, 1], strides = [1, 1]} : vector<4x4xf32> to vector<4x1xf32>
    %53 = vector.extract_strided_slice %44 {offsets = [1, 0], sizes = [1, 256], strides = [1, 1]} : vector<4x256xf32> to vector<1x256xf32>
    %54 = vector.broadcast %52 : vector<4x1xf32> to vector<4x256xf32>
    %55 = vector.broadcast %53 : vector<1x256xf32> to vector<4x256xf32>
    %56 = arith.mulf %54, %55 : vector<4x256xf32>
    %57 = arith.addf %51, %56 : vector<4x256xf32>
    %58 = vector.extract_strided_slice %45 {offsets = [0, 2], sizes = [4, 1], strides = [1, 1]} : vector<4x4xf32> to vector<4x1xf32>
    %59 = vector.extract_strided_slice %44 {offsets = [2, 0], sizes = [1, 256], strides = [1, 1]} : vector<4x256xf32> to vector<1x256xf32>
    %60 = vector.broadcast %58 : vector<4x1xf32> to vector<4x256xf32>
    %61 = vector.broadcast %59 : vector<1x256xf32> to vector<4x256xf32>
    %62 = arith.mulf %60, %61 : vector<4x256xf32>
    %63 = arith.addf %57, %62 : vector<4x256xf32>
    %64 = vector.extract_strided_slice %45 {offsets = [0, 3], sizes = [4, 1], strides = [1, 1]} : vector<4x4xf32> to vector<4x1xf32>
    %65 = vector.extract_strided_slice %44 {offsets = [3, 0], sizes = [1, 256], strides = [1, 1]} : vector<4x256xf32> to vector<1x256xf32>
    %66 = vector.broadcast %64 : vector<4x1xf32> to vector<4x256xf32>
    %67 = vector.broadcast %65 : vector<1x256xf32> to vector<4x256xf32>
    %68 = arith.mulf %66, %67 : vector<4x256xf32>
    %69 = arith.addf %63, %68 : vector<4x256xf32>
    %c15_i32 = arith.constant 15 : i32
    %70 = tpu.dynamic_rotate %8 by %c15_i32 dim 1 : vector<4x256xf32>, i32 -> vector<4x256xf32>
    %71 = vector.extract_strided_slice %2 {offsets = [2, 0], sizes = [1, 256], strides = [1, 1]} : vector<9x256xf32> to vector<1x256xf32>
    %72 = vector.broadcast %71 : vector<1x256xf32> to vector<4x256xf32>
    %73 = arith.mulf %70, %72 : vector<4x256xf32>
    %74 = vector.extract_strided_slice %3 {offsets = [0, 8], sizes = [4, 4], strides = [1, 1]} : vector<4x36xf32> to vector<4x4xf32>
    %75 = vector.extract_strided_slice %74 {offsets = [0, 0], sizes = [4, 1], strides = [1, 1]} : vector<4x4xf32> to vector<4x1xf32>
    %76 = vector.extract_strided_slice %73 {offsets = [0, 0], sizes = [1, 256], strides = [1, 1]} : vector<4x256xf32> to vector<1x256xf32>
    %77 = vector.broadcast %75 : vector<4x1xf32> to vector<4x256xf32>
    %78 = vector.broadcast %76 : vector<1x256xf32> to vector<4x256xf32>
    %79 = arith.mulf %77, %78 : vector<4x256xf32>
    %80 = arith.addf %69, %79 : vector<4x256xf32>
    %81 = vector.extract_strided_slice %74 {offsets = [0, 1], sizes = [4, 1], strides = [1, 1]} : vector<4x4xf32> to vector<4x1xf32>
    %82 = vector.extract_strided_slice %73 {offsets = [1, 0], sizes = [1, 256], strides = [1, 1]} : vector<4x256xf32> to vector<1x256xf32>
    %83 = vector.broadcast %81 : vector<4x1xf32> to vector<4x256xf32>
    %84 = vector.broadcast %82 : vector<1x256xf32> to vector<4x256xf32>
    %85 = arith.mulf %83, %84 : vector<4x256xf32>
    %86 = arith.addf %80, %85 : vector<4x256xf32>
    %87 = vector.extract_strided_slice %74 {offsets = [0, 2], sizes = [4, 1], strides = [1, 1]} : vector<4x4xf32> to vector<4x1xf32>
    %88 = vector.extract_strided_slice %73 {offsets = [2, 0], sizes = [1, 256], strides = [1, 1]} : vector<4x256xf32> to vector<1x256xf32>
    %89 = vector.broadcast %87 : vector<4x1xf32> to vector<4x256xf32>
    %90 = vector.broadcast %88 : vector<1x256xf32> to vector<4x256xf32>
    %91 = arith.mulf %89, %90 : vector<4x256xf32>
    %92 = arith.addf %86, %91 : vector<4x256xf32>
    %93 = vector.extract_strided_slice %74 {offsets = [0, 3], sizes = [4, 1], strides = [1, 1]} : vector<4x4xf32> to vector<4x1xf32>
    %94 = vector.extract_strided_slice %73 {offsets = [3, 0], sizes = [1, 256], strides = [1, 1]} : vector<4x256xf32> to vector<1x256xf32>
    %95 = vector.broadcast %93 : vector<4x1xf32> to vector<4x256xf32>
    %96 = vector.broadcast %94 : vector<1x256xf32> to vector<4x256xf32>
    %97 = arith.mulf %95, %96 : vector<4x256xf32>
    %98 = arith.addf %92, %97 : vector<4x256xf32>
    %c1_i32 = arith.constant 1 : i32
    %99 = tpu.dynamic_rotate %8 by %c1_i32 dim 1 : vector<4x256xf32>, i32 -> vector<4x256xf32>
    %100 = vector.extract_strided_slice %2 {offsets = [3, 0], sizes = [1, 256], strides = [1, 1]} : vector<9x256xf32> to vector<1x256xf32>
    %101 = vector.broadcast %100 : vector<1x256xf32> to vector<4x256xf32>
    %102 = arith.mulf %99, %101 : vector<4x256xf32>
    %103 = vector.extract_strided_slice %3 {offsets = [0, 12], sizes = [4, 4], strides = [1, 1]} : vector<4x36xf32> to vector<4x4xf32>
    %104 = vector.extract_strided_slice %103 {offsets = [0, 0], sizes = [4, 1], strides = [1, 1]} : vector<4x4xf32> to vector<4x1xf32>
    %105 = vector.extract_strided_slice %102 {offsets = [0, 0], sizes = [1, 256], strides = [1, 1]} : vector<4x256xf32> to vector<1x256xf32>
    %106 = vector.broadcast %104 : vector<4x1xf32> to vector<4x256xf32>
    %107 = vector.broadcast %105 : vector<1x256xf32> to vector<4x256xf32>
    %108 = arith.mulf %106, %107 : vector<4x256xf32>
    %109 = arith.addf %98, %108 : vector<4x256xf32>
    %110 = vector.extract_strided_slice %103 {offsets = [0, 1], sizes = [4, 1], strides = [1, 1]} : vector<4x4xf32> to vector<4x1xf32>
    %111 = vector.extract_strided_slice %102 {offsets = [1, 0], sizes = [1, 256], strides = [1, 1]} : vector<4x256xf32> to vector<1x256xf32>
    %112 = vector.broadcast %110 : vector<4x1xf32> to vector<4x256xf32>
    %113 = vector.broadcast %111 : vector<1x256xf32> to vector<4x256xf32>
    %114 = arith.mulf %112, %113 : vector<4x256xf32>
    %115 = arith.addf %109, %114 : vector<4x256xf32>
    %116 = vector.extract_strided_slice %103 {offsets = [0, 2], sizes = [4, 1], strides = [1, 1]} : vector<4x4xf32> to vector<4x1xf32>
    %117 = vector.extract_strided_slice %102 {offsets = [2, 0], sizes = [1, 256], strides = [1, 1]} : vector<4x256xf32> to vector<1x256xf32>
    %118 = vector.broadcast %116 : vector<4x1xf32> to vector<4x256xf32>
    %119 = vector.broadcast %117 : vector<1x256xf32> to vector<4x256xf32>
    %120 = arith.mulf %118, %119 : vector<4x256xf32>
    %121 = arith.addf %115, %120 : vector<4x256xf32>
    %122 = vector.extract_strided_slice %103 {offsets = [0, 3], sizes = [4, 1], strides = [1, 1]} : vector<4x4xf32> to vector<4x1xf32>
    %123 = vector.extract_strided_slice %102 {offsets = [3, 0], sizes = [1, 256], strides = [1, 1]} : vector<4x256xf32> to vector<1x256xf32>
    %124 = vector.broadcast %122 : vector<4x1xf32> to vector<4x256xf32>
    %125 = vector.broadcast %123 : vector<1x256xf32> to vector<4x256xf32>
    %126 = arith.mulf %124, %125 : vector<4x256xf32>
    %127 = arith.addf %121, %126 : vector<4x256xf32>
    %128 = vector.extract_strided_slice %3 {offsets = [0, 16], sizes = [4, 4], strides = [1, 1]} : vector<4x36xf32> to vector<4x4xf32>
    %129 = vector.extract_strided_slice %128 {offsets = [0, 0], sizes = [4, 1], strides = [1, 1]} : vector<4x4xf32> to vector<4x1xf32>
    %130 = vector.extract_strided_slice %8 {offsets = [0, 0], sizes = [1, 256], strides = [1, 1]} : vector<4x256xf32> to vector<1x256xf32>
    %131 = vector.broadcast %129 : vector<4x1xf32> to vector<4x256xf32>
    %132 = vector.broadcast %130 : vector<1x256xf32> to vector<4x256xf32>
    %133 = arith.mulf %131, %132 : vector<4x256xf32>
    %134 = arith.addf %127, %133 : vector<4x256xf32>
    %135 = vector.extract_strided_slice %128 {offsets = [0, 1], sizes = [4, 1], strides = [1, 1]} : vector<4x4xf32> to vector<4x1xf32>
    %136 = vector.extract_strided_slice %8 {offsets = [1, 0], sizes = [1, 256], strides = [1, 1]} : vector<4x256xf32> to vector<1x256xf32>
    %137 = vector.broadcast %135 : vector<4x1xf32> to vector<4x256xf32>
    %138 = vector.broadcast %136 : vector<1x256xf32> to vector<4x256xf32>
    %139 = arith.mulf %137, %138 : vector<4x256xf32>
    %140 = arith.addf %134, %139 : vector<4x256xf32>
    %141 = vector.extract_strided_slice %128 {offsets = [0, 2], sizes = [4, 1], strides = [1, 1]} : vector<4x4xf32> to vector<4x1xf32>
    %142 = vector.extract_strided_slice %8 {offsets = [2, 0], sizes = [1, 256], strides = [1, 1]} : vector<4x256xf32> to vector<1x256xf32>
    %143 = vector.broadcast %141 : vector<4x1xf32> to vector<4x256xf32>
    %144 = vector.broadcast %142 : vector<1x256xf32> to vector<4x256xf32>
    %145 = arith.mulf %143, %144 : vector<4x256xf32>
    %146 = arith.addf %140, %145 : vector<4x256xf32>
    %147 = vector.extract_strided_slice %128 {offsets = [0, 3], sizes = [4, 1], strides = [1, 1]} : vector<4x4xf32> to vector<4x1xf32>
    %148 = vector.extract_strided_slice %8 {offsets = [3, 0], sizes = [1, 256], strides = [1, 1]} : vector<4x256xf32> to vector<1x256xf32>
    %149 = vector.broadcast %147 : vector<4x1xf32> to vector<4x256xf32>
    %150 = vector.broadcast %148 : vector<1x256xf32> to vector<4x256xf32>
    %151 = arith.mulf %149, %150 : vector<4x256xf32>
    %152 = arith.addf %146, %151 : vector<4x256xf32>
    %c255_i32 = arith.constant 255 : i32
    %153 = tpu.dynamic_rotate %8 by %c255_i32 dim 1 : vector<4x256xf32>, i32 -> vector<4x256xf32>
    %154 = vector.extract_strided_slice %2 {offsets = [5, 0], sizes = [1, 256], strides = [1, 1]} : vector<9x256xf32> to vector<1x256xf32>
    %155 = vector.broadcast %154 : vector<1x256xf32> to vector<4x256xf32>
    %156 = arith.mulf %153, %155 : vector<4x256xf32>
    %157 = vector.extract_strided_slice %3 {offsets = [0, 20], sizes = [4, 4], strides = [1, 1]} : vector<4x36xf32> to vector<4x4xf32>
    %158 = vector.extract_strided_slice %157 {offsets = [0, 0], sizes = [4, 1], strides = [1, 1]} : vector<4x4xf32> to vector<4x1xf32>
    %159 = vector.extract_strided_slice %156 {offsets = [0, 0], sizes = [1, 256], strides = [1, 1]} : vector<4x256xf32> to vector<1x256xf32>
    %160 = vector.broadcast %158 : vector<4x1xf32> to vector<4x256xf32>
    %161 = vector.broadcast %159 : vector<1x256xf32> to vector<4x256xf32>
    %162 = arith.mulf %160, %161 : vector<4x256xf32>
    %163 = arith.addf %152, %162 : vector<4x256xf32>
    %164 = vector.extract_strided_slice %157 {offsets = [0, 1], sizes = [4, 1], strides = [1, 1]} : vector<4x4xf32> to vector<4x1xf32>
    %165 = vector.extract_strided_slice %156 {offsets = [1, 0], sizes = [1, 256], strides = [1, 1]} : vector<4x256xf32> to vector<1x256xf32>
    %166 = vector.broadcast %164 : vector<4x1xf32> to vector<4x256xf32>
    %167 = vector.broadcast %165 : vector<1x256xf32> to vector<4x256xf32>
    %168 = arith.mulf %166, %167 : vector<4x256xf32>
    %169 = arith.addf %163, %168 : vector<4x256xf32>
    %170 = vector.extract_strided_slice %157 {offsets = [0, 2], sizes = [4, 1], strides = [1, 1]} : vector<4x4xf32> to vector<4x1xf32>
    %171 = vector.extract_strided_slice %156 {offsets = [2, 0], sizes = [1, 256], strides = [1, 1]} : vector<4x256xf32> to vector<1x256xf32>
    %172 = vector.broadcast %170 : vector<4x1xf32> to vector<4x256xf32>
    %173 = vector.broadcast %171 : vector<1x256xf32> to vector<4x256xf32>
    %174 = arith.mulf %172, %173 : vector<4x256xf32>
    %175 = arith.addf %169, %174 : vector<4x256xf32>
    %176 = vector.extract_strided_slice %157 {offsets = [0, 3], sizes = [4, 1], strides = [1, 1]} : vector<4x4xf32> to vector<4x1xf32>
    %177 = vector.extract_strided_slice %156 {offsets = [3, 0], sizes = [1, 256], strides = [1, 1]} : vector<4x256xf32> to vector<1x256xf32>
    %178 = vector.broadcast %176 : vector<4x1xf32> to vector<4x256xf32>
    %179 = vector.broadcast %177 : vector<1x256xf32> to vector<4x256xf32>
    %180 = arith.mulf %178, %179 : vector<4x256xf32>
    %181 = arith.addf %175, %180 : vector<4x256xf32>
    %c241_i32 = arith.constant 241 : i32
    %182 = tpu.dynamic_rotate %8 by %c241_i32 dim 1 : vector<4x256xf32>, i32 -> vector<4x256xf32>
    %183 = vector.extract_strided_slice %2 {offsets = [6, 0], sizes = [1, 256], strides = [1, 1]} : vector<9x256xf32> to vector<1x256xf32>
    %184 = vector.broadcast %183 : vector<1x256xf32> to vector<4x256xf32>
    %185 = arith.mulf %182, %184 : vector<4x256xf32>
    %186 = vector.extract_strided_slice %3 {offsets = [0, 24], sizes = [4, 4], strides = [1, 1]} : vector<4x36xf32> to vector<4x4xf32>
    %187 = vector.extract_strided_slice %186 {offsets = [0, 0], sizes = [4, 1], strides = [1, 1]} : vector<4x4xf32> to vector<4x1xf32>
    %188 = vector.extract_strided_slice %185 {offsets = [0, 0], sizes = [1, 256], strides = [1, 1]} : vector<4x256xf32> to vector<1x256xf32>
    %189 = vector.broadcast %187 : vector<4x1xf32> to vector<4x256xf32>
    %190 = vector.broadcast %188 : vector<1x256xf32> to vector<4x256xf32>
    %191 = arith.mulf %189, %190 : vector<4x256xf32>
    %192 = arith.addf %181, %191 : vector<4x256xf32>
    %193 = vector.extract_strided_slice %186 {offsets = [0, 1], sizes = [4, 1], strides = [1, 1]} : vector<4x4xf32> to vector<4x1xf32>
    %194 = vector.extract_strided_slice %185 {offsets = [1, 0], sizes = [1, 256], strides = [1, 1]} : vector<4x256xf32> to vector<1x256xf32>
    %195 = vector.broadcast %193 : vector<4x1xf32> to vector<4x256xf32>
    %196 = vector.broadcast %194 : vector<1x256xf32> to vector<4x256xf32>
    %197 = arith.mulf %195, %196 : vector<4x256xf32>
    %198 = arith.addf %192, %197 : vector<4x256xf32>
    %199 = vector.extract_strided_slice %186 {offsets = [0, 2], sizes = [4, 1], strides = [1, 1]} : vector<4x4xf32> to vector<4x1xf32>
    %200 = vector.extract_strided_slice %185 {offsets = [2, 0], sizes = [1, 256], strides = [1, 1]} : vector<4x256xf32> to vector<1x256xf32>
    %201 = vector.broadcast %199 : vector<4x1xf32> to vector<4x256xf32>
    %202 = vector.broadcast %200 : vector<1x256xf32> to vector<4x256xf32>
    %203 = arith.mulf %201, %202 : vector<4x256xf32>
    %204 = arith.addf %198, %203 : vector<4x256xf32>
    %205 = vector.extract_strided_slice %186 {offsets = [0, 3], sizes = [4, 1], strides = [1, 1]} : vector<4x4xf32> to vector<4x1xf32>
    %206 = vector.extract_strided_slice %185 {offsets = [3, 0], sizes = [1, 256], strides = [1, 1]} : vector<4x256xf32> to vector<1x256xf32>
    %207 = vector.broadcast %205 : vector<4x1xf32> to vector<4x256xf32>
    %208 = vector.broadcast %206 : vector<1x256xf32> to vector<4x256xf32>
    %209 = arith.mulf %207, %208 : vector<4x256xf32>
    %210 = arith.addf %204, %209 : vector<4x256xf32>
    %c240_i32 = arith.constant 240 : i32
    %211 = tpu.dynamic_rotate %8 by %c240_i32 dim 1 : vector<4x256xf32>, i32 -> vector<4x256xf32>
    %212 = vector.extract_strided_slice %2 {offsets = [7, 0], sizes = [1, 256], strides = [1, 1]} : vector<9x256xf32> to vector<1x256xf32>
    %213 = vector.broadcast %212 : vector<1x256xf32> to vector<4x256xf32>
    %214 = arith.mulf %211, %213 : vector<4x256xf32>
    %215 = vector.extract_strided_slice %3 {offsets = [0, 28], sizes = [4, 4], strides = [1, 1]} : vector<4x36xf32> to vector<4x4xf32>
    %216 = vector.extract_strided_slice %215 {offsets = [0, 0], sizes = [4, 1], strides = [1, 1]} : vector<4x4xf32> to vector<4x1xf32>
    %217 = vector.extract_strided_slice %214 {offsets = [0, 0], sizes = [1, 256], strides = [1, 1]} : vector<4x256xf32> to vector<1x256xf32>
    %218 = vector.broadcast %216 : vector<4x1xf32> to vector<4x256xf32>
    %219 = vector.broadcast %217 : vector<1x256xf32> to vector<4x256xf32>
    %220 = arith.mulf %218, %219 : vector<4x256xf32>
    %221 = arith.addf %210, %220 : vector<4x256xf32>
    %222 = vector.extract_strided_slice %215 {offsets = [0, 1], sizes = [4, 1], strides = [1, 1]} : vector<4x4xf32> to vector<4x1xf32>
    %223 = vector.extract_strided_slice %214 {offsets = [1, 0], sizes = [1, 256], strides = [1, 1]} : vector<4x256xf32> to vector<1x256xf32>
    %224 = vector.broadcast %222 : vector<4x1xf32> to vector<4x256xf32>
    %225 = vector.broadcast %223 : vector<1x256xf32> to vector<4x256xf32>
    %226 = arith.mulf %224, %225 : vector<4x256xf32>
    %227 = arith.addf %221, %226 : vector<4x256xf32>
    %228 = vector.extract_strided_slice %215 {offsets = [0, 2], sizes = [4, 1], strides = [1, 1]} : vector<4x4xf32> to vector<4x1xf32>
    %229 = vector.extract_strided_slice %214 {offsets = [2, 0], sizes = [1, 256], strides = [1, 1]} : vector<4x256xf32> to vector<1x256xf32>
    %230 = vector.broadcast %228 : vector<4x1xf32> to vector<4x256xf32>
    %231 = vector.broadcast %229 : vector<1x256xf32> to vector<4x256xf32>
    %232 = arith.mulf %230, %231 : vector<4x256xf32>
    %233 = arith.addf %227, %232 : vector<4x256xf32>
    %234 = vector.extract_strided_slice %215 {offsets = [0, 3], sizes = [4, 1], strides = [1, 1]} : vector<4x4xf32> to vector<4x1xf32>
    %235 = vector.extract_strided_slice %214 {offsets = [3, 0], sizes = [1, 256], strides = [1, 1]} : vector<4x256xf32> to vector<1x256xf32>
    %236 = vector.broadcast %234 : vector<4x1xf32> to vector<4x256xf32>
    %237 = vector.broadcast %235 : vector<1x256xf32> to vector<4x256xf32>
    %238 = arith.mulf %236, %237 : vector<4x256xf32>
    %239 = arith.addf %233, %238 : vector<4x256xf32>
    %c239_i32 = arith.constant 239 : i32
    %240 = tpu.dynamic_rotate %8 by %c239_i32 dim 1 : vector<4x256xf32>, i32 -> vector<4x256xf32>
    %241 = vector.extract_strided_slice %2 {offsets = [8, 0], sizes = [1, 256], strides = [1, 1]} : vector<9x256xf32> to vector<1x256xf32>
    %242 = vector.broadcast %241 : vector<1x256xf32> to vector<4x256xf32>
    %243 = arith.mulf %240, %242 : vector<4x256xf32>
    %244 = vector.extract_strided_slice %3 {offsets = [0, 32], sizes = [4, 4], strides = [1, 1]} : vector<4x36xf32> to vector<4x4xf32>
    %245 = vector.extract_strided_slice %244 {offsets = [0, 0], sizes = [4, 1], strides = [1, 1]} : vector<4x4xf32> to vector<4x1xf32>
    %246 = vector.extract_strided_slice %243 {offsets = [0, 0], sizes = [1, 256], strides = [1, 1]} : vector<4x256xf32> to vector<1x256xf32>
    %247 = vector.broadcast %245 : vector<4x1xf32> to vector<4x256xf32>
    %248 = vector.broadcast %246 : vector<1x256xf32> to vector<4x256xf32>
    %249 = arith.mulf %247, %248 : vector<4x256xf32>
    %250 = arith.addf %239, %249 : vector<4x256xf32>
    %251 = vector.extract_strided_slice %244 {offsets = [0, 1], sizes = [4, 1], strides = [1, 1]} : vector<4x4xf32> to vector<4x1xf32>
    %252 = vector.extract_strided_slice %243 {offsets = [1, 0], sizes = [1, 256], strides = [1, 1]} : vector<4x256xf32> to vector<1x256xf32>
    %253 = vector.broadcast %251 : vector<4x1xf32> to vector<4x256xf32>
    %254 = vector.broadcast %252 : vector<1x256xf32> to vector<4x256xf32>
    %255 = arith.mulf %253, %254 : vector<4x256xf32>
    %256 = arith.addf %250, %255 : vector<4x256xf32>
    %257 = vector.extract_strided_slice %244 {offsets = [0, 2], sizes = [4, 1], strides = [1, 1]} : vector<4x4xf32> to vector<4x1xf32>
    %258 = vector.extract_strided_slice %243 {offsets = [2, 0], sizes = [1, 256], strides = [1, 1]} : vector<4x256xf32> to vector<1x256xf32>
    %259 = vector.broadcast %257 : vector<4x1xf32> to vector<4x256xf32>
    %260 = vector.broadcast %258 : vector<1x256xf32> to vector<4x256xf32>
    %261 = arith.mulf %259, %260 : vector<4x256xf32>
    %262 = arith.addf %256, %261 : vector<4x256xf32>
    %263 = vector.extract_strided_slice %244 {offsets = [0, 3], sizes = [4, 1], strides = [1, 1]} : vector<4x4xf32> to vector<4x1xf32>
    %264 = vector.extract_strided_slice %243 {offsets = [3, 0], sizes = [1, 256], strides = [1, 1]} : vector<4x256xf32> to vector<1x256xf32>
    %265 = vector.broadcast %263 : vector<4x1xf32> to vector<4x256xf32>
    %266 = vector.broadcast %264 : vector<1x256xf32> to vector<4x256xf32>
    %267 = arith.mulf %265, %266 : vector<4x256xf32>
    %268 = arith.addf %262, %267 : vector<4x256xf32>
    %cst_13 = arith.constant 0.000000e+00 : f32
    %269 = vector.broadcast %cst_13 : f32 to vector<4x256xf32>
    %270 = arith.maximumf %268, %269 : vector<4x256xf32>
    %cst_14 = arith.constant 0.000000e+00 : f32
    %271 = vector.broadcast %cst_14 : f32 to vector<4x256xf32>
    %272 = vector.broadcast %6 : vector<4x1xf32> to vector<4x256xf32>
    %273 = arith.addf %271, %272 : vector<4x256xf32>
    %c17_i32_15 = arith.constant 17 : i32
    %274 = tpu.dynamic_rotate %270 by %c17_i32_15 dim 1 : vector<4x256xf32>, i32 -> vector<4x256xf32>
    %275 = vector.extract_strided_slice %2 {offsets = [0, 0], sizes = [1, 256], strides = [1, 1]} : vector<9x256xf32> to vector<1x256xf32>
    %276 = vector.broadcast %275 : vector<1x256xf32> to vector<4x256xf32>
    %277 = arith.mulf %274, %276 : vector<4x256xf32>
    %278 = vector.extract_strided_slice %4 {offsets = [0, 0], sizes = [4, 4], strides = [1, 1]} : vector<4x36xf32> to vector<4x4xf32>
    %279 = vector.extract_strided_slice %278 {offsets = [0, 0], sizes = [4, 1], strides = [1, 1]} : vector<4x4xf32> to vector<4x1xf32>
    %280 = vector.extract_strided_slice %277 {offsets = [0, 0], sizes = [1, 256], strides = [1, 1]} : vector<4x256xf32> to vector<1x256xf32>
    %281 = vector.broadcast %279 : vector<4x1xf32> to vector<4x256xf32>
    %282 = vector.broadcast %280 : vector<1x256xf32> to vector<4x256xf32>
    %283 = arith.mulf %281, %282 : vector<4x256xf32>
    %284 = arith.addf %273, %283 : vector<4x256xf32>
    %285 = vector.extract_strided_slice %278 {offsets = [0, 1], sizes = [4, 1], strides = [1, 1]} : vector<4x4xf32> to vector<4x1xf32>
    %286 = vector.extract_strided_slice %277 {offsets = [1, 0], sizes = [1, 256], strides = [1, 1]} : vector<4x256xf32> to vector<1x256xf32>
    %287 = vector.broadcast %285 : vector<4x1xf32> to vector<4x256xf32>
    %288 = vector.broadcast %286 : vector<1x256xf32> to vector<4x256xf32>
    %289 = arith.mulf %287, %288 : vector<4x256xf32>
    %290 = arith.addf %284, %289 : vector<4x256xf32>
    %291 = vector.extract_strided_slice %278 {offsets = [0, 2], sizes = [4, 1], strides = [1, 1]} : vector<4x4xf32> to vector<4x1xf32>
    %292 = vector.extract_strided_slice %277 {offsets = [2, 0], sizes = [1, 256], strides = [1, 1]} : vector<4x256xf32> to vector<1x256xf32>
    %293 = vector.broadcast %291 : vector<4x1xf32> to vector<4x256xf32>
    %294 = vector.broadcast %292 : vector<1x256xf32> to vector<4x256xf32>
    %295 = arith.mulf %293, %294 : vector<4x256xf32>
    %296 = arith.addf %290, %295 : vector<4x256xf32>
    %297 = vector.extract_strided_slice %278 {offsets = [0, 3], sizes = [4, 1], strides = [1, 1]} : vector<4x4xf32> to vector<4x1xf32>
    %298 = vector.extract_strided_slice %277 {offsets = [3, 0], sizes = [1, 256], strides = [1, 1]} : vector<4x256xf32> to vector<1x256xf32>
    %299 = vector.broadcast %297 : vector<4x1xf32> to vector<4x256xf32>
    %300 = vector.broadcast %298 : vector<1x256xf32> to vector<4x256xf32>
    %301 = arith.mulf %299, %300 : vector<4x256xf32>
    %302 = arith.addf %296, %301 : vector<4x256xf32>
    %c16_i32_16 = arith.constant 16 : i32
    %303 = tpu.dynamic_rotate %270 by %c16_i32_16 dim 1 : vector<4x256xf32>, i32 -> vector<4x256xf32>
    %304 = vector.extract_strided_slice %2 {offsets = [1, 0], sizes = [1, 256], strides = [1, 1]} : vector<9x256xf32> to vector<1x256xf32>
    %305 = vector.broadcast %304 : vector<1x256xf32> to vector<4x256xf32>
    %306 = arith.mulf %303, %305 : vector<4x256xf32>
    %307 = vector.extract_strided_slice %4 {offsets = [0, 4], sizes = [4, 4], strides = [1, 1]} : vector<4x36xf32> to vector<4x4xf32>
    %308 = vector.extract_strided_slice %307 {offsets = [0, 0], sizes = [4, 1], strides = [1, 1]} : vector<4x4xf32> to vector<4x1xf32>
    %309 = vector.extract_strided_slice %306 {offsets = [0, 0], sizes = [1, 256], strides = [1, 1]} : vector<4x256xf32> to vector<1x256xf32>
    %310 = vector.broadcast %308 : vector<4x1xf32> to vector<4x256xf32>
    %311 = vector.broadcast %309 : vector<1x256xf32> to vector<4x256xf32>
    %312 = arith.mulf %310, %311 : vector<4x256xf32>
    %313 = arith.addf %302, %312 : vector<4x256xf32>
    %314 = vector.extract_strided_slice %307 {offsets = [0, 1], sizes = [4, 1], strides = [1, 1]} : vector<4x4xf32> to vector<4x1xf32>
    %315 = vector.extract_strided_slice %306 {offsets = [1, 0], sizes = [1, 256], strides = [1, 1]} : vector<4x256xf32> to vector<1x256xf32>
    %316 = vector.broadcast %314 : vector<4x1xf32> to vector<4x256xf32>
    %317 = vector.broadcast %315 : vector<1x256xf32> to vector<4x256xf32>
    %318 = arith.mulf %316, %317 : vector<4x256xf32>
    %319 = arith.addf %313, %318 : vector<4x256xf32>
    %320 = vector.extract_strided_slice %307 {offsets = [0, 2], sizes = [4, 1], strides = [1, 1]} : vector<4x4xf32> to vector<4x1xf32>
    %321 = vector.extract_strided_slice %306 {offsets = [2, 0], sizes = [1, 256], strides = [1, 1]} : vector<4x256xf32> to vector<1x256xf32>
    %322 = vector.broadcast %320 : vector<4x1xf32> to vector<4x256xf32>
    %323 = vector.broadcast %321 : vector<1x256xf32> to vector<4x256xf32>
    %324 = arith.mulf %322, %323 : vector<4x256xf32>
    %325 = arith.addf %319, %324 : vector<4x256xf32>
    %326 = vector.extract_strided_slice %307 {offsets = [0, 3], sizes = [4, 1], strides = [1, 1]} : vector<4x4xf32> to vector<4x1xf32>
    %327 = vector.extract_strided_slice %306 {offsets = [3, 0], sizes = [1, 256], strides = [1, 1]} : vector<4x256xf32> to vector<1x256xf32>
    %328 = vector.broadcast %326 : vector<4x1xf32> to vector<4x256xf32>
    %329 = vector.broadcast %327 : vector<1x256xf32> to vector<4x256xf32>
    %330 = arith.mulf %328, %329 : vector<4x256xf32>
    %331 = arith.addf %325, %330 : vector<4x256xf32>
    %c15_i32_17 = arith.constant 15 : i32
    %332 = tpu.dynamic_rotate %270 by %c15_i32_17 dim 1 : vector<4x256xf32>, i32 -> vector<4x256xf32>
    %333 = vector.extract_strided_slice %2 {offsets = [2, 0], sizes = [1, 256], strides = [1, 1]} : vector<9x256xf32> to vector<1x256xf32>
    %334 = vector.broadcast %333 : vector<1x256xf32> to vector<4x256xf32>
    %335 = arith.mulf %332, %334 : vector<4x256xf32>
    %336 = vector.extract_strided_slice %4 {offsets = [0, 8], sizes = [4, 4], strides = [1, 1]} : vector<4x36xf32> to vector<4x4xf32>
    %337 = vector.extract_strided_slice %336 {offsets = [0, 0], sizes = [4, 1], strides = [1, 1]} : vector<4x4xf32> to vector<4x1xf32>
    %338 = vector.extract_strided_slice %335 {offsets = [0, 0], sizes = [1, 256], strides = [1, 1]} : vector<4x256xf32> to vector<1x256xf32>
    %339 = vector.broadcast %337 : vector<4x1xf32> to vector<4x256xf32>
    %340 = vector.broadcast %338 : vector<1x256xf32> to vector<4x256xf32>
    %341 = arith.mulf %339, %340 : vector<4x256xf32>
    %342 = arith.addf %331, %341 : vector<4x256xf32>
    %343 = vector.extract_strided_slice %336 {offsets = [0, 1], sizes = [4, 1], strides = [1, 1]} : vector<4x4xf32> to vector<4x1xf32>
    %344 = vector.extract_strided_slice %335 {offsets = [1, 0], sizes = [1, 256], strides = [1, 1]} : vector<4x256xf32> to vector<1x256xf32>
    %345 = vector.broadcast %343 : vector<4x1xf32> to vector<4x256xf32>
    %346 = vector.broadcast %344 : vector<1x256xf32> to vector<4x256xf32>
    %347 = arith.mulf %345, %346 : vector<4x256xf32>
    %348 = arith.addf %342, %347 : vector<4x256xf32>
    %349 = vector.extract_strided_slice %336 {offsets = [0, 2], sizes = [4, 1], strides = [1, 1]} : vector<4x4xf32> to vector<4x1xf32>
    %350 = vector.extract_strided_slice %335 {offsets = [2, 0], sizes = [1, 256], strides = [1, 1]} : vector<4x256xf32> to vector<1x256xf32>
    %351 = vector.broadcast %349 : vector<4x1xf32> to vector<4x256xf32>
    %352 = vector.broadcast %350 : vector<1x256xf32> to vector<4x256xf32>
    %353 = arith.mulf %351, %352 : vector<4x256xf32>
    %354 = arith.addf %348, %353 : vector<4x256xf32>
    %355 = vector.extract_strided_slice %336 {offsets = [0, 3], sizes = [4, 1], strides = [1, 1]} : vector<4x4xf32> to vector<4x1xf32>
    %356 = vector.extract_strided_slice %335 {offsets = [3, 0], sizes = [1, 256], strides = [1, 1]} : vector<4x256xf32> to vector<1x256xf32>
    %357 = vector.broadcast %355 : vector<4x1xf32> to vector<4x256xf32>
    %358 = vector.broadcast %356 : vector<1x256xf32> to vector<4x256xf32>
    %359 = arith.mulf %357, %358 : vector<4x256xf32>
    %360 = arith.addf %354, %359 : vector<4x256xf32>
    %c1_i32_18 = arith.constant 1 : i32
    %361 = tpu.dynamic_rotate %270 by %c1_i32_18 dim 1 : vector<4x256xf32>, i32 -> vector<4x256xf32>
    %362 = vector.extract_strided_slice %2 {offsets = [3, 0], sizes = [1, 256], strides = [1, 1]} : vector<9x256xf32> to vector<1x256xf32>
    %363 = vector.broadcast %362 : vector<1x256xf32> to vector<4x256xf32>
    %364 = arith.mulf %361, %363 : vector<4x256xf32>
    %365 = vector.extract_strided_slice %4 {offsets = [0, 12], sizes = [4, 4], strides = [1, 1]} : vector<4x36xf32> to vector<4x4xf32>
    %366 = vector.extract_strided_slice %365 {offsets = [0, 0], sizes = [4, 1], strides = [1, 1]} : vector<4x4xf32> to vector<4x1xf32>
    %367 = vector.extract_strided_slice %364 {offsets = [0, 0], sizes = [1, 256], strides = [1, 1]} : vector<4x256xf32> to vector<1x256xf32>
    %368 = vector.broadcast %366 : vector<4x1xf32> to vector<4x256xf32>
    %369 = vector.broadcast %367 : vector<1x256xf32> to vector<4x256xf32>
    %370 = arith.mulf %368, %369 : vector<4x256xf32>
    %371 = arith.addf %360, %370 : vector<4x256xf32>
    %372 = vector.extract_strided_slice %365 {offsets = [0, 1], sizes = [4, 1], strides = [1, 1]} : vector<4x4xf32> to vector<4x1xf32>
    %373 = vector.extract_strided_slice %364 {offsets = [1, 0], sizes = [1, 256], strides = [1, 1]} : vector<4x256xf32> to vector<1x256xf32>
    %374 = vector.broadcast %372 : vector<4x1xf32> to vector<4x256xf32>
    %375 = vector.broadcast %373 : vector<1x256xf32> to vector<4x256xf32>
    %376 = arith.mulf %374, %375 : vector<4x256xf32>
    %377 = arith.addf %371, %376 : vector<4x256xf32>
    %378 = vector.extract_strided_slice %365 {offsets = [0, 2], sizes = [4, 1], strides = [1, 1]} : vector<4x4xf32> to vector<4x1xf32>
    %379 = vector.extract_strided_slice %364 {offsets = [2, 0], sizes = [1, 256], strides = [1, 1]} : vector<4x256xf32> to vector<1x256xf32>
    %380 = vector.broadcast %378 : vector<4x1xf32> to vector<4x256xf32>
    %381 = vector.broadcast %379 : vector<1x256xf32> to vector<4x256xf32>
    %382 = arith.mulf %380, %381 : vector<4x256xf32>
    %383 = arith.addf %377, %382 : vector<4x256xf32>
    %384 = vector.extract_strided_slice %365 {offsets = [0, 3], sizes = [4, 1], strides = [1, 1]} : vector<4x4xf32> to vector<4x1xf32>
    %385 = vector.extract_strided_slice %364 {offsets = [3, 0], sizes = [1, 256], strides = [1, 1]} : vector<4x256xf32> to vector<1x256xf32>
    %386 = vector.broadcast %384 : vector<4x1xf32> to vector<4x256xf32>
    %387 = vector.broadcast %385 : vector<1x256xf32> to vector<4x256xf32>
    %388 = arith.mulf %386, %387 : vector<4x256xf32>
    %389 = arith.addf %383, %388 : vector<4x256xf32>
    %390 = vector.extract_strided_slice %4 {offsets = [0, 16], sizes = [4, 4], strides = [1, 1]} : vector<4x36xf32> to vector<4x4xf32>
    %391 = vector.extract_strided_slice %390 {offsets = [0, 0], sizes = [4, 1], strides = [1, 1]} : vector<4x4xf32> to vector<4x1xf32>
    %392 = vector.extract_strided_slice %270 {offsets = [0, 0], sizes = [1, 256], strides = [1, 1]} : vector<4x256xf32> to vector<1x256xf32>
    %393 = vector.broadcast %391 : vector<4x1xf32> to vector<4x256xf32>
    %394 = vector.broadcast %392 : vector<1x256xf32> to vector<4x256xf32>
    %395 = arith.mulf %393, %394 : vector<4x256xf32>
    %396 = arith.addf %389, %395 : vector<4x256xf32>
    %397 = vector.extract_strided_slice %390 {offsets = [0, 1], sizes = [4, 1], strides = [1, 1]} : vector<4x4xf32> to vector<4x1xf32>
    %398 = vector.extract_strided_slice %270 {offsets = [1, 0], sizes = [1, 256], strides = [1, 1]} : vector<4x256xf32> to vector<1x256xf32>
    %399 = vector.broadcast %397 : vector<4x1xf32> to vector<4x256xf32>
    %400 = vector.broadcast %398 : vector<1x256xf32> to vector<4x256xf32>
    %401 = arith.mulf %399, %400 : vector<4x256xf32>
    %402 = arith.addf %396, %401 : vector<4x256xf32>
    %403 = vector.extract_strided_slice %390 {offsets = [0, 2], sizes = [4, 1], strides = [1, 1]} : vector<4x4xf32> to vector<4x1xf32>
    %404 = vector.extract_strided_slice %270 {offsets = [2, 0], sizes = [1, 256], strides = [1, 1]} : vector<4x256xf32> to vector<1x256xf32>
    %405 = vector.broadcast %403 : vector<4x1xf32> to vector<4x256xf32>
    %406 = vector.broadcast %404 : vector<1x256xf32> to vector<4x256xf32>
    %407 = arith.mulf %405, %406 : vector<4x256xf32>
    %408 = arith.addf %402, %407 : vector<4x256xf32>
    %409 = vector.extract_strided_slice %390 {offsets = [0, 3], sizes = [4, 1], strides = [1, 1]} : vector<4x4xf32> to vector<4x1xf32>
    %410 = vector.extract_strided_slice %270 {offsets = [3, 0], sizes = [1, 256], strides = [1, 1]} : vector<4x256xf32> to vector<1x256xf32>
    %411 = vector.broadcast %409 : vector<4x1xf32> to vector<4x256xf32>
    %412 = vector.broadcast %410 : vector<1x256xf32> to vector<4x256xf32>
    %413 = arith.mulf %411, %412 : vector<4x256xf32>
    %414 = arith.addf %408, %413 : vector<4x256xf32>
    %c255_i32_19 = arith.constant 255 : i32
    %415 = tpu.dynamic_rotate %270 by %c255_i32_19 dim 1 : vector<4x256xf32>, i32 -> vector<4x256xf32>
    %416 = vector.extract_strided_slice %2 {offsets = [5, 0], sizes = [1, 256], strides = [1, 1]} : vector<9x256xf32> to vector<1x256xf32>
    %417 = vector.broadcast %416 : vector<1x256xf32> to vector<4x256xf32>
    %418 = arith.mulf %415, %417 : vector<4x256xf32>
    %419 = vector.extract_strided_slice %4 {offsets = [0, 20], sizes = [4, 4], strides = [1, 1]} : vector<4x36xf32> to vector<4x4xf32>
    %420 = vector.extract_strided_slice %419 {offsets = [0, 0], sizes = [4, 1], strides = [1, 1]} : vector<4x4xf32> to vector<4x1xf32>
    %421 = vector.extract_strided_slice %418 {offsets = [0, 0], sizes = [1, 256], strides = [1, 1]} : vector<4x256xf32> to vector<1x256xf32>
    %422 = vector.broadcast %420 : vector<4x1xf32> to vector<4x256xf32>
    %423 = vector.broadcast %421 : vector<1x256xf32> to vector<4x256xf32>
    %424 = arith.mulf %422, %423 : vector<4x256xf32>
    %425 = arith.addf %414, %424 : vector<4x256xf32>
    %426 = vector.extract_strided_slice %419 {offsets = [0, 1], sizes = [4, 1], strides = [1, 1]} : vector<4x4xf32> to vector<4x1xf32>
    %427 = vector.extract_strided_slice %418 {offsets = [1, 0], sizes = [1, 256], strides = [1, 1]} : vector<4x256xf32> to vector<1x256xf32>
    %428 = vector.broadcast %426 : vector<4x1xf32> to vector<4x256xf32>
    %429 = vector.broadcast %427 : vector<1x256xf32> to vector<4x256xf32>
    %430 = arith.mulf %428, %429 : vector<4x256xf32>
    %431 = arith.addf %425, %430 : vector<4x256xf32>
    %432 = vector.extract_strided_slice %419 {offsets = [0, 2], sizes = [4, 1], strides = [1, 1]} : vector<4x4xf32> to vector<4x1xf32>
    %433 = vector.extract_strided_slice %418 {offsets = [2, 0], sizes = [1, 256], strides = [1, 1]} : vector<4x256xf32> to vector<1x256xf32>
    %434 = vector.broadcast %432 : vector<4x1xf32> to vector<4x256xf32>
    %435 = vector.broadcast %433 : vector<1x256xf32> to vector<4x256xf32>
    %436 = arith.mulf %434, %435 : vector<4x256xf32>
    %437 = arith.addf %431, %436 : vector<4x256xf32>
    %438 = vector.extract_strided_slice %419 {offsets = [0, 3], sizes = [4, 1], strides = [1, 1]} : vector<4x4xf32> to vector<4x1xf32>
    %439 = vector.extract_strided_slice %418 {offsets = [3, 0], sizes = [1, 256], strides = [1, 1]} : vector<4x256xf32> to vector<1x256xf32>
    %440 = vector.broadcast %438 : vector<4x1xf32> to vector<4x256xf32>
    %441 = vector.broadcast %439 : vector<1x256xf32> to vector<4x256xf32>
    %442 = arith.mulf %440, %441 : vector<4x256xf32>
    %443 = arith.addf %437, %442 : vector<4x256xf32>
    %c241_i32_20 = arith.constant 241 : i32
    %444 = tpu.dynamic_rotate %270 by %c241_i32_20 dim 1 : vector<4x256xf32>, i32 -> vector<4x256xf32>
    %445 = vector.extract_strided_slice %2 {offsets = [6, 0], sizes = [1, 256], strides = [1, 1]} : vector<9x256xf32> to vector<1x256xf32>
    %446 = vector.broadcast %445 : vector<1x256xf32> to vector<4x256xf32>
    %447 = arith.mulf %444, %446 : vector<4x256xf32>
    %448 = vector.extract_strided_slice %4 {offsets = [0, 24], sizes = [4, 4], strides = [1, 1]} : vector<4x36xf32> to vector<4x4xf32>
    %449 = vector.extract_strided_slice %448 {offsets = [0, 0], sizes = [4, 1], strides = [1, 1]} : vector<4x4xf32> to vector<4x1xf32>
    %450 = vector.extract_strided_slice %447 {offsets = [0, 0], sizes = [1, 256], strides = [1, 1]} : vector<4x256xf32> to vector<1x256xf32>
    %451 = vector.broadcast %449 : vector<4x1xf32> to vector<4x256xf32>
    %452 = vector.broadcast %450 : vector<1x256xf32> to vector<4x256xf32>
    %453 = arith.mulf %451, %452 : vector<4x256xf32>
    %454 = arith.addf %443, %453 : vector<4x256xf32>
    %455 = vector.extract_strided_slice %448 {offsets = [0, 1], sizes = [4, 1], strides = [1, 1]} : vector<4x4xf32> to vector<4x1xf32>
    %456 = vector.extract_strided_slice %447 {offsets = [1, 0], sizes = [1, 256], strides = [1, 1]} : vector<4x256xf32> to vector<1x256xf32>
    %457 = vector.broadcast %455 : vector<4x1xf32> to vector<4x256xf32>
    %458 = vector.broadcast %456 : vector<1x256xf32> to vector<4x256xf32>
    %459 = arith.mulf %457, %458 : vector<4x256xf32>
    %460 = arith.addf %454, %459 : vector<4x256xf32>
    %461 = vector.extract_strided_slice %448 {offsets = [0, 2], sizes = [4, 1], strides = [1, 1]} : vector<4x4xf32> to vector<4x1xf32>
    %462 = vector.extract_strided_slice %447 {offsets = [2, 0], sizes = [1, 256], strides = [1, 1]} : vector<4x256xf32> to vector<1x256xf32>
    %463 = vector.broadcast %461 : vector<4x1xf32> to vector<4x256xf32>
    %464 = vector.broadcast %462 : vector<1x256xf32> to vector<4x256xf32>
    %465 = arith.mulf %463, %464 : vector<4x256xf32>
    %466 = arith.addf %460, %465 : vector<4x256xf32>
    %467 = vector.extract_strided_slice %448 {offsets = [0, 3], sizes = [4, 1], strides = [1, 1]} : vector<4x4xf32> to vector<4x1xf32>
    %468 = vector.extract_strided_slice %447 {offsets = [3, 0], sizes = [1, 256], strides = [1, 1]} : vector<4x256xf32> to vector<1x256xf32>
    %469 = vector.broadcast %467 : vector<4x1xf32> to vector<4x256xf32>
    %470 = vector.broadcast %468 : vector<1x256xf32> to vector<4x256xf32>
    %471 = arith.mulf %469, %470 : vector<4x256xf32>
    %472 = arith.addf %466, %471 : vector<4x256xf32>
    %c240_i32_21 = arith.constant 240 : i32
    %473 = tpu.dynamic_rotate %270 by %c240_i32_21 dim 1 : vector<4x256xf32>, i32 -> vector<4x256xf32>
    %474 = vector.extract_strided_slice %2 {offsets = [7, 0], sizes = [1, 256], strides = [1, 1]} : vector<9x256xf32> to vector<1x256xf32>
    %475 = vector.broadcast %474 : vector<1x256xf32> to vector<4x256xf32>
    %476 = arith.mulf %473, %475 : vector<4x256xf32>
    %477 = vector.extract_strided_slice %4 {offsets = [0, 28], sizes = [4, 4], strides = [1, 1]} : vector<4x36xf32> to vector<4x4xf32>
    %478 = vector.extract_strided_slice %477 {offsets = [0, 0], sizes = [4, 1], strides = [1, 1]} : vector<4x4xf32> to vector<4x1xf32>
    %479 = vector.extract_strided_slice %476 {offsets = [0, 0], sizes = [1, 256], strides = [1, 1]} : vector<4x256xf32> to vector<1x256xf32>
    %480 = vector.broadcast %478 : vector<4x1xf32> to vector<4x256xf32>
    %481 = vector.broadcast %479 : vector<1x256xf32> to vector<4x256xf32>
    %482 = arith.mulf %480, %481 : vector<4x256xf32>
    %483 = arith.addf %472, %482 : vector<4x256xf32>
    %484 = vector.extract_strided_slice %477 {offsets = [0, 1], sizes = [4, 1], strides = [1, 1]} : vector<4x4xf32> to vector<4x1xf32>
    %485 = vector.extract_strided_slice %476 {offsets = [1, 0], sizes = [1, 256], strides = [1, 1]} : vector<4x256xf32> to vector<1x256xf32>
    %486 = vector.broadcast %484 : vector<4x1xf32> to vector<4x256xf32>
    %487 = vector.broadcast %485 : vector<1x256xf32> to vector<4x256xf32>
    %488 = arith.mulf %486, %487 : vector<4x256xf32>
    %489 = arith.addf %483, %488 : vector<4x256xf32>
    %490 = vector.extract_strided_slice %477 {offsets = [0, 2], sizes = [4, 1], strides = [1, 1]} : vector<4x4xf32> to vector<4x1xf32>
    %491 = vector.extract_strided_slice %476 {offsets = [2, 0], sizes = [1, 256], strides = [1, 1]} : vector<4x256xf32> to vector<1x256xf32>
    %492 = vector.broadcast %490 : vector<4x1xf32> to vector<4x256xf32>
    %493 = vector.broadcast %491 : vector<1x256xf32> to vector<4x256xf32>
    %494 = arith.mulf %492, %493 : vector<4x256xf32>
    %495 = arith.addf %489, %494 : vector<4x256xf32>
    %496 = vector.extract_strided_slice %477 {offsets = [0, 3], sizes = [4, 1], strides = [1, 1]} : vector<4x4xf32> to vector<4x1xf32>
    %497 = vector.extract_strided_slice %476 {offsets = [3, 0], sizes = [1, 256], strides = [1, 1]} : vector<4x256xf32> to vector<1x256xf32>
    %498 = vector.broadcast %496 : vector<4x1xf32> to vector<4x256xf32>
    %499 = vector.broadcast %497 : vector<1x256xf32> to vector<4x256xf32>
    %500 = arith.mulf %498, %499 : vector<4x256xf32>
    %501 = arith.addf %495, %500 : vector<4x256xf32>
    %c239_i32_22 = arith.constant 239 : i32
    %502 = tpu.dynamic_rotate %270 by %c239_i32_22 dim 1 : vector<4x256xf32>, i32 -> vector<4x256xf32>
    %503 = vector.extract_strided_slice %2 {offsets = [8, 0], sizes = [1, 256], strides = [1, 1]} : vector<9x256xf32> to vector<1x256xf32>
    %504 = vector.broadcast %503 : vector<1x256xf32> to vector<4x256xf32>
    %505 = arith.mulf %502, %504 : vector<4x256xf32>
    %506 = vector.extract_strided_slice %4 {offsets = [0, 32], sizes = [4, 4], strides = [1, 1]} : vector<4x36xf32> to vector<4x4xf32>
    %507 = vector.extract_strided_slice %506 {offsets = [0, 0], sizes = [4, 1], strides = [1, 1]} : vector<4x4xf32> to vector<4x1xf32>
    %508 = vector.extract_strided_slice %505 {offsets = [0, 0], sizes = [1, 256], strides = [1, 1]} : vector<4x256xf32> to vector<1x256xf32>
    %509 = vector.broadcast %507 : vector<4x1xf32> to vector<4x256xf32>
    %510 = vector.broadcast %508 : vector<1x256xf32> to vector<4x256xf32>
    %511 = arith.mulf %509, %510 : vector<4x256xf32>
    %512 = arith.addf %501, %511 : vector<4x256xf32>
    %513 = vector.extract_strided_slice %506 {offsets = [0, 1], sizes = [4, 1], strides = [1, 1]} : vector<4x4xf32> to vector<4x1xf32>
    %514 = vector.extract_strided_slice %505 {offsets = [1, 0], sizes = [1, 256], strides = [1, 1]} : vector<4x256xf32> to vector<1x256xf32>
    %515 = vector.broadcast %513 : vector<4x1xf32> to vector<4x256xf32>
    %516 = vector.broadcast %514 : vector<1x256xf32> to vector<4x256xf32>
    %517 = arith.mulf %515, %516 : vector<4x256xf32>
    %518 = arith.addf %512, %517 : vector<4x256xf32>
    %519 = vector.extract_strided_slice %506 {offsets = [0, 2], sizes = [4, 1], strides = [1, 1]} : vector<4x4xf32> to vector<4x1xf32>
    %520 = vector.extract_strided_slice %505 {offsets = [2, 0], sizes = [1, 256], strides = [1, 1]} : vector<4x256xf32> to vector<1x256xf32>
    %521 = vector.broadcast %519 : vector<4x1xf32> to vector<4x256xf32>
    %522 = vector.broadcast %520 : vector<1x256xf32> to vector<4x256xf32>
    %523 = arith.mulf %521, %522 : vector<4x256xf32>
    %524 = arith.addf %518, %523 : vector<4x256xf32>
    %525 = vector.extract_strided_slice %506 {offsets = [0, 3], sizes = [4, 1], strides = [1, 1]} : vector<4x4xf32> to vector<4x1xf32>
    %526 = vector.extract_strided_slice %505 {offsets = [3, 0], sizes = [1, 256], strides = [1, 1]} : vector<4x256xf32> to vector<1x256xf32>
    %527 = vector.broadcast %525 : vector<4x1xf32> to vector<4x256xf32>
    %528 = vector.broadcast %526 : vector<1x256xf32> to vector<4x256xf32>
    %529 = arith.mulf %527, %528 : vector<4x256xf32>
    %530 = arith.addf %524, %529 : vector<4x256xf32>
    %531 = arith.addf %530, %1 : vector<4x256xf32>
    %c0_23 = arith.constant 0 : index
    %c0_24 = arith.constant 0 : index
    %c0_25 = arith.constant 0 : index
    %532 = vector.load %arg7[%c0_23, %c0_24, %c0_25] : memref<1x4x256xf32, #tpu.memory_space<vmem>>, vector<1x4x256xf32>
    %533 = vector.shape_cast %532 : vector<1x4x256xf32> to vector<4x256xf32>
    %534 = vector.shape_cast %531 : vector<4x256xf32> to vector<1x4x256xf32>
    tpu.vector_store %arg7[%c0_23, %c0_24, %c0_25], %534 {strides = array<i32>} : memref<1x4x256xf32, #tpu.memory_space<vmem>>, vector<1x4x256xf32>,
    return
  }
  func.func @transform_0(%arg0: i32) -> (i32, i32, i32) {
    %c0_i32 = arith.constant 0 : i32
    %c0_i32_0 = arith.constant 0 : i32
    %c0_i32_1 = arith.constant 0 : i32
    return %arg0, %c0_i32, %c0_i32_0 : i32, i32, i32
  }
  func.func @transform_1(%arg0: i32) -> (i32, i32) {
    %c0_i32 = arith.constant 0 : i32
    %c0_i32_0 = arith.constant 0 : i32
    %c0_i32_1 = arith.constant 0 : i32
    return %c0_i32, %c0_i32_0 : i32, i32
  }
  func.func @transform_2(%arg0: i32) -> (i32, i32) {
    %c0_i32 = arith.constant 0 : i32
    %c0_i32_0 = arith.constant 0 : i32
    %c0_i32_1 = arith.constant 0 : i32
    return %c0_i32, %c0_i32_0 : i32, i32
  }
  func.func @transform_3(%arg0: i32) -> (i32, i32) {
    %c0_i32 = arith.constant 0 : i32
    %c0_i32_0 = arith.constant 0 : i32
    %c0_i32_1 = arith.constant 0 : i32
    return %c0_i32, %c0_i32_0 : i32, i32
  }
  func.func @transform_4(%arg0: i32) -> (i32, i32) {
    %c0_i32 = arith.constant 0 : i32
    %c0_i32_0 = arith.constant 0 : i32
    %c0_i32_1 = arith.constant 0 : i32
    return %c0_i32, %c0_i32_0 : i32, i32
  }
  func.func @transform_5(%arg0: i32) -> (i32, i32) {
    %c0_i32 = arith.constant 0 : i32
    %c0_i32_0 = arith.constant 0 : i32
    %c0_i32_1 = arith.constant 0 : i32
    return %c0_i32, %c0_i32_0 : i32, i32
  }
  func.func @transform_6(%arg0: i32) -> (i32, i32, i32) {
    %c0_i32 = arith.constant 0 : i32
    %c0_i32_0 = arith.constant 0 : i32
    %c0_i32_1 = arith.constant 0 : i32
    return %arg0, %c0_i32, %c0_i32_0 : i32, i32, i32
  }
}

</mosaic_0001>

<llo_original>
// kernel: tpu_custom_call.1
$region0: #{tpu_custom_call.1}
  #allocation0 [shape = 'u32[]', space=smem, size = 0x4, offset = 0x4, fixed_abs, tag = 'smem constant byte address 0x4 - core index']
  #allocation1 [shape = 'u32[144,128]{1,0:T(1,128)}', space=vmem, size = 0x12000, scoped, tag = 'internal scratch']
  %s0 = inlined_call_operand.hbm [shape: f32[2,4,256], index: 0, kind: input, shape index: {}]
  %s1 = inlined_call_operand.vmem [shape: f32[4,36], index: 1, kind: input, shape index: {}]
  %s2 = inlined_call_operand.vmem [shape: f32[4,1], index: 2, kind: input, shape index: {}]
  %s3 = inlined_call_operand.vmem [shape: f32[4,36], index: 3, kind: input, shape index: {}]
  %s4 = inlined_call_operand.vmem [shape: f32[4,1], index: 4, kind: input, shape index: {}]
  %s5 = inlined_call_operand.hbm [shape: f32[9,256], index: 5, kind: input, shape index: {}]
  %s6 = inlined_call_operand.hbm [shape: f32[2,4,256], index: 6, kind: output, shape index: {}]
  %s7 = sld [smem:[#allocation0]]
  $region65: #{tpu_custom_call.1} parent=0
    _
  %s9 = ssub.s32 1, %s7
  %s10 = scalar_select 0, %s9, %s7
  $region1: #{tpu_custom_call.1} parent=0
    #allocation2 [shape = 'u8[8192]{0}', space=vmem, size = 0x2000, scoped, tag = 'input window, operand 0']
    #allocation3 [shape = 's32[2]{0}', space=sflag, size = 0x8, scoped, tag = 'scoped memory for tpu_custom_call.1']
    #allocation4 [shape = 's32[2]{0}', space=sflag, size = 0x8, scoped, tag = 'scoped memory for tpu_custom_call.1']
    #allocation5 [shape = 'u8[16384]{0}', space=vmem, size = 0x4000, scoped, tag = 'input window, operand 5, single buffered']
    #allocation6 [shape = 's32[1]{0}', space=sflag, size = 0x4, scoped, tag = 'scoped memory for tpu_custom_call.1']
    #allocation7 [shape = 'u8[8192]{0}', space=vmem, size = 0x2000, scoped, tag = 'output window, operand 0']
    %11 = vsyncpa [#allocation3], 0
    %s12 = scalar_lea.sflag [#allocation3], 1
    %13 = vsyncpa %s12, 0
    %14 = vsyncpa [#allocation6], 0
    %15 = vsyncpa [#allocation4], 0
    %s16 = scalar_lea.sflag [#allocation4], 1
    %17 = vsyncpa %s16, 0
    loop: start=0, step=1, limit=4
    $region2: #{tpu_custom_call.1} parent=1 // loop_pre_header
      _
    $region3: #{tpu_custom_call.1} parent=1 // loop_header
      %s19 = sphi 0, %s23
      %p20 = scmp.ge.s32.totalorder %s19, 4
      %s29 = sphi 0, %s31
      %s32 = sphi 0, %s29
      %s33 = sphi 0, %s32
      %s49 = sphi 0, %s33
      %s53 = sphi 0, %s53
      %s55 = sphi 0, %s53
      %s56 = sphi 0, %s55
      %s70 = sphi 0, %s56
      %s74 = sphi 0, %s74
      %s76 = sphi 0, %s74
      %s77 = sphi 0, %s76
      %s91 = sphi 0, %s77
      %s95 = sphi 0, %s95
      %s97 = sphi 0, %s95
      %s98 = sphi 0, %s97
      %s112 = sphi 0, %s98
      %s116 = sphi 0, %s116
      %s118 = sphi 0, %s116
      %s119 = sphi 0, %s118
      %s133 = sphi 0, %s119
      %s137 = sphi 0, %s137
      %s139 = sphi 0, %s137
      %s140 = sphi 0, %s139
      %s154 = sphi 0, %s140
      %s160 = sphi 0, %s162
      %s163 = sphi 0, %s160
      %s164 = sphi 0, %s163
      %s180 = sphi 0, %s164
    $region4: #{tpu_custom_call.1} parent=1 // loop_header_branch
      %22 = sbr.rel (%p20) target = $region8
    $region5: #{tpu_custom_call.1} parent=1 // loop_body
      %s24 = ssub.s32 %s19, 1
      %s25 = ssub.s32 %s19, 2
      %s26 = sadd.s32 %s19, 1
      %s27 = ssub.s32 %s19, %s26
      %p28 = scmp.eq.s32.totalorder %s27, 0
      %s30 = sadd.s32 %s29, 1
      %s31 = scalar_select %p28, %s29, %s30
      %p34 = pneg %p28
      %p35 = scmp.eq.s32.totalorder %s19, 1
      %p36 = por %p34, %p35
      %p37 = scmp.ne.s32.totalorder %s29, %s32
      %p38 = scmp.eq.s32.totalorder %s19, 0
      %p39 = por %p37, %p38
      %p40 = scmp.ne.s32.totalorder %s29, %s32
      %p41 = scmp.eq.s32.totalorder %s24, 1
      %p42 = por %p40, %p41
      %p43 = scmp.ne.s32.totalorder %s32, %s33
      %p44 = scmp.eq.s32.totalorder %s24, 0
      %p45 = por %p43, %p44
      %p46 = scmp.ne.s32.totalorder %s32, %s33
      %p47 = scmp.eq.s32.totalorder %s25, 1
      %p48 = por %p46, %p47
      %p50 = scmp.ne.s32.totalorder %s33, %s49
      %p51 = scmp.eq.s32.totalorder %s25, 0
      %p52 = por %p50, %p51
      %s54 = sadd.s32 %s53, 1
      %p57 = scmp.eq.s32.totalorder %s19, 1
      %p58 = scmp.ne.s32.totalorder %s53, %s55
      %p59 = scmp.eq.s32.totalorder %s19, 0
      %p60 = por %p58, %p59
      %p61 = scmp.ne.s32.totalorder %s53, %s55
      %p62 = scmp.eq.s32.totalorder %s24, 1
      %p63 = por %p61, %p62
      %p64 = scmp.ne.s32.totalorder %s55, %s56
      %p65 = scmp.eq.s32.totalorder %s24, 0
      %p66 = por %p64, %p65
      %p67 = scmp.ne.s32.totalorder %s55, %s56
      %p68 = scmp.eq.s32.totalorder %s25, 1
      %p69 = por %p67, %p68
      %p71 = scmp.ne.s32.totalorder %s56, %s70
      %p72 = scmp.eq.s32.totalorder %s25, 0
      %p73 = por %p71, %p72
      %s75 = sadd.s32 %s74, 1
      %p78 = scmp.eq.s32.totalorder %s19, 1
      %p79 = scmp.ne.s32.totalorder %s74, %s76
      %p80 = scmp.eq.s32.totalorder %s19, 0
      %p81 = por %p79, %p80
      %p82 = scmp.ne.s32.totalorder %s74, %s76
      %p83 = scmp.eq.s32.totalorder %s24, 1
      %p84 = por %p82, %p83
      %p85 = scmp.ne.s32.totalorder %s76, %s77
      %p86 = scmp.eq.s32.totalorder %s24, 0
      %p87 = por %p85, %p86
      %p88 = scmp.ne.s32.totalorder %s76, %s77
      %p89 = scmp.eq.s32.totalorder %s25, 1
      %p90 = por %p88, %p89
      %p92 = scmp.ne.s32.totalorder %s77, %s91
      %p93 = scmp.eq.s32.totalorder %s25, 0
      %p94 = por %p92, %p93
      %s96 = sadd.s32 %s95, 1
      %p99 = scmp.eq.s32.totalorder %s19, 1
      %p100 = scmp.ne.s32.totalorder %s95, %s97
      %p101 = scmp.eq.s32.totalorder %s19, 0
      %p102 = por %p100, %p101
      %p103 = scmp.ne.s32.totalorder %s95, %s97
      %p104 = scmp.eq.s32.totalorder %s24, 1
      %p105 = por %p103, %p104
      %p106 = scmp.ne.s32.totalorder %s97, %s98
      %p107 = scmp.eq.s32.totalorder %s24, 0
      %p108 = por %p106, %p107
      %p109 = scmp.ne.s32.totalorder %s97, %s98
      %p110 = scmp.eq.s32.totalorder %s25, 1
      %p111 = por %p109, %p110
      %p113 = scmp.ne.s32.totalorder %s98, %s112
      %p114 = scmp.eq.s32.totalorder %s25, 0
      %p115 = por %p113, %p114
      %s117 = sadd.s32 %s116, 1
      %p120 = scmp.eq.s32.totalorder %s19, 1
      %p121 = scmp.ne.s32.totalorder %s116, %s118
      %p122 = scmp.eq.s32.totalorder %s19, 0
      %p123 = por %p121, %p122
      %p124 = scmp.ne.s32.totalorder %s116, %s118
      %p125 = scmp.eq.s32.totalorder %s24, 1
      %p126 = por %p124, %p125
      %p127 = scmp.ne.s32.totalorder %s118, %s119
      %p128 = scmp.eq.s32.totalorder %s24, 0
      %p129 = por %p127, %p128
      %p130 = scmp.ne.s32.totalorder %s118, %s119
      %p131 = scmp.eq.s32.totalorder %s25, 1
      %p132 = por %p130, %p131
      %p134 = scmp.ne.s32.totalorder %s119, %s133
      %p135 = scmp.eq.s32.totalorder %s25, 0
      %p136 = por %p134, %p135
      %s138 = sadd.s32 %s137, 1
      %p141 = scmp.eq.s32.totalorder %s19, 1
      %p142 = scmp.ne.s32.totalorder %s137, %s139
      %p143 = scmp.eq.s32.totalorder %s19, 0
      %p144 = por %p142, %p143
      %p145 = scmp.ne.s32.totalorder %s137, %s139
      %p146 = scmp.eq.s32.totalorder %s24, 1
      %p147 = por %p145, %p146
      %p148 = scmp.ne.s32.totalorder %s139, %s140
      %p149 = scmp.eq.s32.totalorder %s24, 0
      %p150 = por %p148, %p149
      %p151 = scmp.ne.s32.totalorder %s139, %s140
      %p152 = scmp.eq.s32.totalorder %s25, 1
      %p153 = por %p151, %p152
      %p155 = scmp.ne.s32.totalorder %s140, %s154
      %p156 = scmp.eq.s32.totalorder %s25, 0
      %p157 = por %p155, %p156
      %s158 = ssub.s32 %s19, %s26
      %p159 = scmp.eq.s32.totalorder %s158, 0
      %s161 = sadd.s32 %s160, 1
      %s162 = scalar_select %p159, %s160, %s161
      %p165 = pneg %p159
      %p166 = scmp.eq.s32.totalorder %s19, 1
      %p167 = por %p165, %p166
      %p168 = scmp.ne.s32.totalorder %s160, %s163
      %p169 = scmp.eq.s32.totalorder %s19, 0
      %p170 = por %p168, %p169
      %p171 = scmp.ne.s32.totalorder %s160, %s163
      %p172 = scmp.eq.s32.totalorder %s24, 1
      %p173 = por %p171, %p172
      %p174 = scmp.ne.s32.totalorder %s163, %s164
      %p175 = scmp.eq.s32.totalorder %s24, 0
      %p176 = por %p174, %p175
      %p177 = scmp.ne.s32.totalorder %s163, %s164
      %p178 = scmp.eq.s32.totalorder %s25, 1
      %p179 = por %p177, %p178
      %p181 = scmp.ne.s32.totalorder %s164, %s180
      %p182 = scmp.eq.s32.totalorder %s25, 0
      %p183 = por %p181, %p182
      %p184 = scmp.le.s32.totalorder 1, %s19
      %p185 = scmp.lt.s32.totalorder %s19, 3
      %p186 = pnand %p184, %p185
      %p187 = pneg %p186
      // Predicated region
      $region9: #{tpu_custom_call.1} parent=5 // pred_check
        _
      $region10: #{tpu_custom_call.1} parent=5 // pred_check_branch
        %189 = sbr.rel (%p186) target = $region12
      $region11: #{tpu_custom_call.1} parent=5 // pred_region
        %s190 = ssub.s32 %s19, 1
        // Predicated region
        $region13: #{tpu_custom_call.1} parent=11 // pred_check
          %p191 = pneg %p66
        $region14: #{tpu_custom_call.1} parent=11 // pred_check_branch
          %193 = sbr.rel (%p191) target = $region16
        $region15: #{tpu_custom_call.1} parent=11 // pred_region
          _
        $region16: #{tpu_custom_call.1} parent=11 // pred_fallthru
          _
        // Predicated region
        $region17: #{tpu_custom_call.1} parent=11 // pred_check
          %p194 = pneg %p87
        $region18: #{tpu_custom_call.1} parent=11 // pred_check_branch
          %196 = sbr.rel (%p194) target = $region20
        $region19: #{tpu_custom_call.1} parent=11 // pred_region
          _
        $region20: #{tpu_custom_call.1} parent=11 // pred_fallthru
          _
        // Predicated region
        $region21: #{tpu_custom_call.1} parent=11 // pred_check
          %p197 = pneg %p108
        $region22: #{tpu_custom_call.1} parent=11 // pred_check_branch
          %199 = sbr.rel (%p197) target = $region24
        $region23: #{tpu_custom_call.1} parent=11 // pred_region
          _
        $region24: #{tpu_custom_call.1} parent=11 // pred_fallthru
          _
        // Predicated region
        $region25: #{tpu_custom_call.1} parent=11 // pred_check
          %p200 = pneg %p129
        $region26: #{tpu_custom_call.1} parent=11 // pred_check_branch
          %202 = sbr.rel (%p200) target = $region28
        $region27: #{tpu_custom_call.1} parent=11 // pred_region
          _
        $region28: #{tpu_custom_call.1} parent=11 // pred_fallthru
          _
        // Predicated region
        $region29: #{tpu_custom_call.1} parent=11 // pred_check
          %p203 = pneg %p150
        $region30: #{tpu_custom_call.1} parent=11 // pred_check_branch
          %205 = sbr.rel (%p203) target = $region32
        $region31: #{tpu_custom_call.1} parent=11 // pred_region
          %s207 = ssub.s32 512, 512
          %208 = vsyncadd [#allocation6], %s207
          %s209 = sshll.u32 [#allocation5], 4
          %s210 = int_to_ptr.vmem [resolvable:$true] %s209
          %215 = dma.hbm_to_vmem [thread:$0]  %s5, 512, %s210, [#allocation6], 256, 256, 16
        $region32: #{tpu_custom_call.1} parent=11 // pred_fallthru
          _
      $region12: #{tpu_custom_call.1} parent=5 // pred_fallthru
        _
      %p216 = scmp.lt.s32.totalorder %s19, 2
      // Predicated region
      $region33: #{tpu_custom_call.1} parent=5 // pred_check
        %p217 = pneg %p216
      $region34: #{tpu_custom_call.1} parent=5 // pred_check_branch
        %219 = sbr.rel (%p217) target = $region36
      $region35: #{tpu_custom_call.1} parent=5 // pred_region
        // Predicated region
        $region37: #{tpu_custom_call.1} parent=35 // pred_check
          %p220 = pneg %p39
        $region38: #{tpu_custom_call.1} parent=35 // pred_check_branch
          %222 = sbr.rel (%p220) target = $region40
        $region39: #{tpu_custom_call.1} parent=35 // pred_region
          %s223 = sand.u32 %s29, 1
          %s224 = scalar_lea.sflag [#allocation3], %s223
          %s225 = sand.u32 %s29, 1
          %s226 = smul.addr %s225, 8
          %s227 = scalar_lea.vmem [#allocation2], %s226
          %s229 = ssub.s32 128, 128
          %230 = vsyncadd %s224, %s229
          %s231 = smul.addr %s19, 2
          %s232 = smul.addr %s231, 64
          %s233 = scalar_lea.hbm %s0, %s232
          %s235 = sshll.u32 %s227, 4
          %s236 = int_to_ptr.vmem [resolvable:$true] %s235
          %238 = dma.hbm_to_vmem [thread:$0]  %s233, 128, %s236, %s224
        $region40: #{tpu_custom_call.1} parent=35 // pred_fallthru
          _
      $region36: #{tpu_custom_call.1} parent=5 // pred_fallthru
        _
      %p239 = scmp.le.s32.totalorder 1, %s19
      %p240 = scmp.lt.s32.totalorder %s19, 3
      %p241 = pnand %p239, %p240
      %p242 = pneg %p241
      // Predicated region
      $region41: #{tpu_custom_call.1} parent=5 // pred_check
        _
      $region42: #{tpu_custom_call.1} parent=5 // pred_check_branch
        %244 = sbr.rel (%p241) target = $region44
      $region43: #{tpu_custom_call.1} parent=5 // pred_region
        %s245 = ssub.s32 %s19, 1
        %s246 = sand.u32 %s32, 1
        %s247 = scalar_lea.sflag [#allocation3], %s246
        %s248 = sand.u32 %s32, 1
        %s249 = smul.addr %s248, 8
        %s250 = scalar_lea.vmem [#allocation2], %s249
        // Predicated region
        $region45: #{tpu_custom_call.1} parent=43 // pred_check
          %p251 = pneg %p45
        $region46: #{tpu_custom_call.1} parent=43 // pred_check_branch
          %253 = sbr.rel (%p251) target = $region48
        $region47: #{tpu_custom_call.1} parent=43 // pred_region
          %254 = dma.done %s247, 128
        $region48: #{tpu_custom_call.1} parent=43 // pred_fallthru
          _
        // Predicated region
        $region49: #{tpu_custom_call.1} parent=43 // pred_check
          %p255 = pneg %p150
        $region50: #{tpu_custom_call.1} parent=43 // pred_check_branch
          %257 = sbr.rel (%p255) target = $region52
        $region51: #{tpu_custom_call.1} parent=43 // pred_region
          %258 = dma.done [#allocation6], 512
        $region52: #{tpu_custom_call.1} parent=43 // pred_fallthru
          _
        %s259 = sand.u32 %s32, 1
        %s260 = scalar_lea.sflag [#allocation3], %s259
        %s261 = sand.u32 %s32, 1
        %s262 = smul.addr %s261, 8
        %s263 = scalar_lea.vmem [#allocation2], %s262
        %p264 = pneg %p45
        %p265 = pneg %p42
        %p266 = pneg %p66
        %p267 = pneg %p63
        %p268 = pneg %p87
        %p269 = pneg %p84
        %p270 = pneg %p108
        %p271 = pneg %p105
        %p272 = pneg %p129
        %p273 = pneg %p126
        %p274 = pneg %p150
        %p275 = pneg %p147
        %p276 = pneg %p176
        %p277 = pneg %p173
        %s278 = sand.u32 %s163, 1
        %s279 = scalar_lea.sflag [#allocation4], %s278
        %s280 = sand.u32 %s163, 1
        %s281 = smul.addr %s280, 8
        %s282 = scalar_lea.vmem [#allocation7], %s281
        %v283 = vld [vmem:[%s250] sm:$0xff]
        %v284 = vld [vmem:[#allocation5] sm:$0xff]
        %v285 = vld [vmem:[#allocation5 + $0x8] sm:$0xff]
        %v286 = vld [vmem:[#allocation5 + $0x10] sm:$0x1]
        %v287 = vld [vmem:[#allocation5 + $0x18] sm:$0x1]
        %v288 = vld [vmem:[%s1] sm:$0xf]
        %v289 = vld [vmem:[%s3] sm:$0xf]
        %v290 = vld [vmem:[%s2] sm:$0xf]
        %v291 = vld [vmem:[%s4] sm:$0xf]
        %v292 = vmax.f32 %v283, 0.0
        %294 = vset.pattern.permute.xlu0 0
        %295 = vperm.xlu0 %294, %v290
        %v296 = vpop.permute.xlu0 %295
        %v298 = vadd.f32 %v296, 0.0
        %v300 = vcombine.high %v292, %v292
        %302 = vrot.lane.b32.xlu0 %v292, 17
        %v303 = vpop.permute.xlu0 %302
        %304 = vrot.lane.b32.xlu0 %v300, 17
        %v305 = vpop.permute.xlu0 %304
        %v306 = vlaneseq
        %v307 = vand.u32 %v306, 127
        %vm308 = vcmp.lt.s32.totalorder %v307, 17
        %v309 = vsel %vm308, %v303, %v305
        %v310 = vsel %vm308, %v305, %v303
        %v311 = vlaneseq
        %v312 = vshrl.u32 %v311, 7
        %v313 = vsub.s32 0, %v312
        %v314 = vrot.slane %v284, %v313
        %v315 = vlaneseq
        %v316 = vshrl.u32 %v315, 7
        %v317 = vsub.s32 0, %v316
        %v318 = vrot.slane %v285, %v317
        %v319 = vmul.f32 %v310, %v314
        %v320 = vmul.f32 %v309, %v318
        %322 = vset.pattern.permute.xlu0 0
        %323 = vperm.xlu0 %322, %v288
        %v324 = vpop.permute.xlu0 %323
        %v326 = vlaneseq
        %v327 = vshrl.u32 %v326, 7
        %v328 = vsub.s32 0, %v327
        %v329 = vrot.slane %v319, %v328
        %v330 = vlaneseq
        %v331 = vshrl.u32 %v330, 7
        %v332 = vsub.s32 0, %v331
        %v333 = vrot.slane %v320, %v332
        %v334 = vmul.f32 %v324, %v329
        %v335 = vmul.f32 %v324, %v333
        %v336 = vadd.f32 %v298, %v334
        %v337 = vadd.f32 %v298, %v335
        %338 = vset.pattern.permute.xlu0 1
        %339 = vperm.xlu0 %338, %v288
        %v340 = vpop.permute.xlu0 %339
        %v342 = vlaneseq
        %v343 = vshrl.u32 %v342, 7
        %v344 = vsub.s32 1, %v343
        %v345 = vrot.slane %v319, %v344
        %v346 = vlaneseq
        %v347 = vshrl.u32 %v346, 7
        %v348 = vsub.s32 1, %v347
        %v349 = vrot.slane %v320, %v348
        %v350 = vmul.f32 %v340, %v345
        %v351 = vmul.f32 %v340, %v349
        %v352 = vadd.f32 %v336, %v350
        %v353 = vadd.f32 %v337, %v351
        %354 = vset.pattern.permute.xlu0 2
        %355 = vperm.xlu0 %354, %v288
        %v356 = vpop.permute.xlu0 %355
        %v358 = vlaneseq
        %v359 = vshrl.u32 %v358, 7
        %v360 = vsub.s32 2, %v359
        %v361 = vrot.slane %v319, %v360
        %v362 = vlaneseq
        %v363 = vshrl.u32 %v362, 7
        %v364 = vsub.s32 2, %v363
        %v365 = vrot.slane %v320, %v364
        %v366 = vmul.f32 %v356, %v361
        %v367 = vmul.f32 %v356, %v365
        %v368 = vadd.f32 %v352, %v366
        %v369 = vadd.f32 %v353, %v367
        %370 = vset.pattern.permute.xlu0 3
        %371 = vperm.xlu0 %370, %v288
        %v372 = vpop.permute.xlu0 %371
        %v374 = vlaneseq
        %v375 = vshrl.u32 %v374, 7
        %v376 = vsub.s32 3, %v375
        %v377 = vrot.slane %v319, %v376
        %v378 = vlaneseq
        %v379 = vshrl.u32 %v378, 7
        %v380 = vsub.s32 3, %v379
        %v381 = vrot.slane %v320, %v380
        %v382 = vmul.f32 %v372, %v377
        %v383 = vmul.f32 %v372, %v381
        %v384 = vadd.f32 %v368, %v382
        %v385 = vadd.f32 %v369, %v383
        %386 = vrot.lane.b32.xlu0 %v292, 16
        %v387 = vpop.permute.xlu0 %386
        %388 = vrot.lane.b32.xlu0 %v300, 16
        %v389 = vpop.permute.xlu0 %388
        %vm390 = vcmp.lt.s32.totalorder %v307, 16
        %v391 = vsel %vm390, %v387, %v389
        %v392 = vsel %vm390, %v389, %v387
        %v393 = vlaneseq
        %v394 = vshrl.u32 %v393, 7
        %v395 = vsub.s32 1, %v394
        %v396 = vrot.slane %v284, %v395
        %v397 = vlaneseq
        %v398 = vshrl.u32 %v397, 7
        %v399 = vsub.s32 1, %v398
        %v400 = vrot.slane %v285, %v399
        %v401 = vmul.f32 %v392, %v396
        %v402 = vmul.f32 %v391, %v400
        %403 = vset.pattern.permute.xlu0 4
        %404 = vperm.xlu0 %403, %v288
        %v405 = vpop.permute.xlu0 %404
        %v407 = vlaneseq
        %v408 = vshrl.u32 %v407, 7
        %v409 = vsub.s32 0, %v408
        %v410 = vrot.slane %v401, %v409
        %v411 = vlaneseq
        %v412 = vshrl.u32 %v411, 7
        %v413 = vsub.s32 0, %v412
        %v414 = vrot.slane %v402, %v413
        %v415 = vmul.f32 %v405, %v410
        %v416 = vmul.f32 %v405, %v414
        %v417 = vadd.f32 %v384, %v415
        %v418 = vadd.f32 %v385, %v416
        %419 = vset.pattern.permute.xlu0 5
        %420 = vperm.xlu0 %419, %v288
        %v421 = vpop.permute.xlu0 %420
        %v423 = vlaneseq
        %v424 = vshrl.u32 %v423, 7
        %v425 = vsub.s32 1, %v424
        %v426 = vrot.slane %v401, %v425
        %v427 = vlaneseq
        %v428 = vshrl.u32 %v427, 7
        %v429 = vsub.s32 1, %v428
        %v430 = vrot.slane %v402, %v429
        %v431 = vmul.f32 %v421, %v426
        %v432 = vmul.f32 %v421, %v430
        %v433 = vadd.f32 %v417, %v431
        %v434 = vadd.f32 %v418, %v432
        %435 = vset.pattern.permute.xlu0 6
        %436 = vperm.xlu0 %435, %v288
        %v437 = vpop.permute.xlu0 %436
        %v439 = vlaneseq
        %v440 = vshrl.u32 %v439, 7
        %v441 = vsub.s32 2, %v440
        %v442 = vrot.slane %v401, %v441
        %v443 = vlaneseq
        %v444 = vshrl.u32 %v443, 7
        %v445 = vsub.s32 2, %v444
        %v446 = vrot.slane %v402, %v445
        %v447 = vmul.f32 %v437, %v442
        %v448 = vmul.f32 %v437, %v446
        %v449 = vadd.f32 %v433, %v447
        %v450 = vadd.f32 %v434, %v448
        %451 = vset.pattern.permute.xlu0 7
        %452 = vperm.xlu0 %451, %v288
        %v453 = vpop.permute.xlu0 %452
        %v455 = vlaneseq
        %v456 = vshrl.u32 %v455, 7
        %v457 = vsub.s32 3, %v456
        %v458 = vrot.slane %v401, %v457
        %v459 = vlaneseq
        %v460 = vshrl.u32 %v459, 7
        %v461 = vsub.s32 3, %v460
        %v462 = vrot.slane %v402, %v461
        %v463 = vmul.f32 %v453, %v458
        %v464 = vmul.f32 %v453, %v462
        %v465 = vadd.f32 %v449, %v463
        %v466 = vadd.f32 %v450, %v464
        %467 = vrot.lane.b32.xlu0 %v292, 15
        %v468 = vpop.permute.xlu0 %467
        %469 = vrot.lane.b32.xlu0 %v300, 15
        %v470 = vpop.permute.xlu0 %469
        %vm471 = vcmp.lt.s32.totalorder %v307, 15
        %v472 = vsel %vm471, %v468, %v470
        %v473 = vsel %vm471, %v470, %v468
        %v474 = vlaneseq
        %v475 = vshrl.u32 %v474, 7
        %v476 = vsub.s32 2, %v475
        %v477 = vrot.slane %v284, %v476
        %v478 = vlaneseq
        %v479 = vshrl.u32 %v478, 7
        %v480 = vsub.s32 2, %v479
        %v481 = vrot.slane %v285, %v480
        %v482 = vmul.f32 %v473, %v477
        %v483 = vmul.f32 %v472, %v481
        %484 = vset.pattern.permute.xlu0 8
        %485 = vperm.xlu0 %484, %v288
        %v486 = vpop.permute.xlu0 %485
        %v488 = vlaneseq
        %v489 = vshrl.u32 %v488, 7
        %v490 = vsub.s32 0, %v489
        %v491 = vrot.slane %v482, %v490
        %v492 = vlaneseq
        %v493 = vshrl.u32 %v492, 7
        %v494 = vsub.s32 0, %v493
        %v495 = vrot.slane %v483, %v494
        %v496 = vmul.f32 %v486, %v491
        %v497 = vmul.f32 %v486, %v495
        %v498 = vadd.f32 %v465, %v496
        %v499 = vadd.f32 %v466, %v497
        %500 = vset.pattern.permute.xlu0 9
        %501 = vperm.xlu0 %500, %v288
        %v502 = vpop.permute.xlu0 %501
        %v504 = vlaneseq
        %v505 = vshrl.u32 %v504, 7
        %v506 = vsub.s32 1, %v505
        %v507 = vrot.slane %v482, %v506
        %v508 = vlaneseq
        %v509 = vshrl.u32 %v508, 7
        %v510 = vsub.s32 1, %v509
        %v511 = vrot.slane %v483, %v510
        %v512 = vmul.f32 %v502, %v507
        %v513 = vmul.f32 %v502, %v511
        %v514 = vadd.f32 %v498, %v512
        %v515 = vadd.f32 %v499, %v513
        %516 = vset.pattern.permute.xlu0 10
        %517 = vperm.xlu0 %516, %v288
        %v518 = vpop.permute.xlu0 %517
        %v520 = vlaneseq
        %v521 = vshrl.u32 %v520, 7
        %v522 = vsub.s32 2, %v521
        %v523 = vrot.slane %v482, %v522
        %v524 = vlaneseq
        %v525 = vshrl.u32 %v524, 7
        %v526 = vsub.s32 2, %v525
        %v527 = vrot.slane %v483, %v526
        %v528 = vmul.f32 %v518, %v523
        %v529 = vmul.f32 %v518, %v527
        %v530 = vadd.f32 %v514, %v528
        %v531 = vadd.f32 %v515, %v529
        %532 = vset.pattern.permute.xlu0 11
        %533 = vperm.xlu0 %532, %v288
        %v534 = vpop.permute.xlu0 %533
        %v536 = vlaneseq
        %v537 = vshrl.u32 %v536, 7
        %v538 = vsub.s32 3, %v537
        %v539 = vrot.slane %v482, %v538
        %v540 = vlaneseq
        %v541 = vshrl.u32 %v540, 7
        %v542 = vsub.s32 3, %v541
        %v543 = vrot.slane %v483, %v542
        %v544 = vmul.f32 %v534, %v539
        %v545 = vmul.f32 %v534, %v543
        %v546 = vadd.f32 %v530, %v544
        %v547 = vadd.f32 %v531, %v545
        %548 = vrot.lane.b32.xlu0 %v292, 1
        %v549 = vpop.permute.xlu0 %548
        %550 = vrot.lane.b32.xlu0 %v300, 1
        %v551 = vpop.permute.xlu0 %550
        %vm552 = vcmp.lt.s32.totalorder %v307, 1
        %v553 = vsel %vm552, %v549, %v551
        %v554 = vsel %vm552, %v551, %v549
        %v555 = vlaneseq
        %v556 = vshrl.u32 %v555, 7
        %v557 = vsub.s32 3, %v556
        %v558 = vrot.slane %v284, %v557
        %v559 = vlaneseq
        %v560 = vshrl.u32 %v559, 7
        %v561 = vsub.s32 3, %v560
        %v562 = vrot.slane %v285, %v561
        %v563 = vmul.f32 %v554, %v558
        %v564 = vmul.f32 %v553, %v562
        %565 = vset.pattern.permute.xlu0 12
        %566 = vperm.xlu0 %565, %v288
        %v567 = vpop.permute.xlu0 %566
        %v569 = vlaneseq
        %v570 = vshrl.u32 %v569, 7
        %v571 = vsub.s32 0, %v570
        %v572 = vrot.slane %v563, %v571
        %v573 = vlaneseq
        %v574 = vshrl.u32 %v573, 7
        %v575 = vsub.s32 0, %v574
        %v576 = vrot.slane %v564, %v575
        %v577 = vmul.f32 %v567, %v572
        %v578 = vmul.f32 %v567, %v576
        %v579 = vadd.f32 %v546, %v577
        %v580 = vadd.f32 %v547, %v578
        %581 = vset.pattern.permute.xlu0 13
        %582 = vperm.xlu0 %581, %v288
        %v583 = vpop.permute.xlu0 %582
        %v585 = vlaneseq
        %v586 = vshrl.u32 %v585, 7
        %v587 = vsub.s32 1, %v586
        %v588 = vrot.slane %v563, %v587
        %v589 = vlaneseq
        %v590 = vshrl.u32 %v589, 7
        %v591 = vsub.s32 1, %v590
        %v592 = vrot.slane %v564, %v591
        %v593 = vmul.f32 %v583, %v588
        %v594 = vmul.f32 %v583, %v592
        %v595 = vadd.f32 %v579, %v593
        %v596 = vadd.f32 %v580, %v594
        %597 = vset.pattern.permute.xlu0 14
        %598 = vperm.xlu0 %597, %v288
        %v599 = vpop.permute.xlu0 %598
        %v601 = vlaneseq
        %v602 = vshrl.u32 %v601, 7
        %v603 = vsub.s32 2, %v602
        %v604 = vrot.slane %v563, %v603
        %v605 = vlaneseq
        %v606 = vshrl.u32 %v605, 7
        %v607 = vsub.s32 2, %v606
        %v608 = vrot.slane %v564, %v607
        %v609 = vmul.f32 %v599, %v604
        %v610 = vmul.f32 %v599, %v608
        %v611 = vadd.f32 %v595, %v609
        %v612 = vadd.f32 %v596, %v610
        %613 = vset.pattern.permute.xlu0 15
        %614 = vperm.xlu0 %613, %v288
        %v615 = vpop.permute.xlu0 %614
        %v617 = vlaneseq
        %v618 = vshrl.u32 %v617, 7
        %v619 = vsub.s32 3, %v618
        %v620 = vrot.slane %v563, %v619
        %v621 = vlaneseq
        %v622 = vshrl.u32 %v621, 7
        %v623 = vsub.s32 3, %v622
        %v624 = vrot.slane %v564, %v623
        %v625 = vmul.f32 %v615, %v620
        %v626 = vmul.f32 %v615, %v624
        %v627 = vadd.f32 %v611, %v625
        %v628 = vadd.f32 %v612, %v626
        %629 = vset.pattern.permute.xlu0 16
        %630 = vperm.xlu0 %629, %v288
        %v631 = vpop.permute.xlu0 %630
        %v633 = vlaneseq
        %v634 = vshrl.u32 %v633, 7
        %v635 = vsub.s32 0, %v634
        %v636 = vrot.slane %v292, %v635
        %v637 = vlaneseq
        %v638 = vshrl.u32 %v637, 7
        %v639 = vsub.s32 4, %v638
        %v640 = vrot.slane %v292, %v639
        %v643 = vlaneseq
        %v644 = vshrl.u32 %v643, 7
        %v645 = vsub.s32 0, %v644
        %v646 = vrot.slane %v636, %v645
        %v647 = vlaneseq
        %v648 = vshrl.u32 %v647, 7
        %v649 = vsub.s32 0, %v648
        %v650 = vrot.slane %v640, %v649
        %v651 = vmul.f32 %v631, %v646
        %v652 = vmul.f32 %v631, %v650
        %v653 = vadd.f32 %v627, %v651
        %v654 = vadd.f32 %v628, %v652
        %655 = vset.pattern.permute.xlu0 17
        %656 = vperm.xlu0 %655, %v288
        %v657 = vpop.permute.xlu0 %656
        %v659 = vlaneseq
        %v660 = vshrl.u32 %v659, 7
        %v661 = vsub.s32 1, %v660
        %v662 = vrot.slane %v292, %v661
        %v663 = vlaneseq
        %v664 = vshrl.u32 %v663, 7
        %v665 = vsub.s32 5, %v664
        %v666 = vrot.slane %v292, %v665
        %v669 = vlaneseq
        %v670 = vshrl.u32 %v669, 7
        %v671 = vsub.s32 1, %v670
        %v672 = vrot.slane %v662, %v671
        %v673 = vlaneseq
        %v674 = vshrl.u32 %v673, 7
        %v675 = vsub.s32 1, %v674
        %v676 = vrot.slane %v666, %v675
        %v677 = vmul.f32 %v657, %v672
        %v678 = vmul.f32 %v657, %v676
        %v679 = vadd.f32 %v653, %v677
        %v680 = vadd.f32 %v654, %v678
        %681 = vset.pattern.permute.xlu0 18
        %682 = vperm.xlu0 %681, %v288
        %v683 = vpop.permute.xlu0 %682
        %v685 = vlaneseq
        %v686 = vshrl.u32 %v685, 7
        %v687 = vsub.s32 2, %v686
        %v688 = vrot.slane %v292, %v687
        %v689 = vlaneseq
        %v690 = vshrl.u32 %v689, 7
        %v691 = vsub.s32 6, %v690
        %v692 = vrot.slane %v292, %v691
        %v695 = vlaneseq
        %v696 = vshrl.u32 %v695, 7
        %v697 = vsub.s32 2, %v696
        %v698 = vrot.slane %v688, %v697
        %v699 = vlaneseq
        %v700 = vshrl.u32 %v699, 7
        %v701 = vsub.s32 2, %v700
        %v702 = vrot.slane %v692, %v701
        %v703 = vmul.f32 %v683, %v698
        %v704 = vmul.f32 %v683, %v702
        %v705 = vadd.f32 %v679, %v703
        %v706 = vadd.f32 %v680, %v704
        %707 = vset.pattern.permute.xlu0 19
        %708 = vperm.xlu0 %707, %v288
        %v709 = vpop.permute.xlu0 %708
        %v711 = vlaneseq
        %v712 = vshrl.u32 %v711, 7
        %v713 = vsub.s32 3, %v712
        %v714 = vrot.slane %v292, %v713
        %v715 = vlaneseq
        %v716 = vshrl.u32 %v715, 7
        %v717 = vsub.s32 7, %v716
        %v718 = vrot.slane %v292, %v717
        %v721 = vlaneseq
        %v722 = vshrl.u32 %v721, 7
        %v723 = vsub.s32 3, %v722
        %v724 = vrot.slane %v714, %v723
        %v725 = vlaneseq
        %v726 = vshrl.u32 %v725, 7
        %v727 = vsub.s32 3, %v726
        %v728 = vrot.slane %v718, %v727
        %v729 = vmul.f32 %v709, %v724
        %v730 = vmul.f32 %v709, %v728
        %v731 = vadd.f32 %v705, %v729
        %v732 = vadd.f32 %v706, %v730
        %733 = vrot.lane.b32.xlu0 %v292, 127
        %v734 = vpop.permute.xlu0 %733
        %735 = vrot.lane.b32.xlu0 %v300, 127
        %v736 = vpop.permute.xlu0 %735
        %vm737 = vcmp.lt.s32.totalorder %v307, 127
        %v738 = vsel %vm737, %v734, %v736
        %v739 = vsel %vm737, %v736, %v734
        %v740 = vlaneseq
        %v741 = vshrl.u32 %v740, 7
        %v742 = vsub.s32 5, %v741
        %v743 = vrot.slane %v284, %v742
        %v744 = vlaneseq
        %v745 = vshrl.u32 %v744, 7
        %v746 = vsub.s32 5, %v745
        %v747 = vrot.slane %v285, %v746
        %v748 = vmul.f32 %v738, %v743
        %v749 = vmul.f32 %v739, %v747
        %750 = vset.pattern.permute.xlu0 20
        %751 = vperm.xlu0 %750, %v288
        %v752 = vpop.permute.xlu0 %751
        %v754 = vlaneseq
        %v755 = vshrl.u32 %v754, 7
        %v756 = vsub.s32 0, %v755
        %v757 = vrot.slane %v748, %v756
        %v758 = vlaneseq
        %v759 = vshrl.u32 %v758, 7
        %v760 = vsub.s32 0, %v759
        %v761 = vrot.slane %v749, %v760
        %v762 = vmul.f32 %v752, %v757
        %v763 = vmul.f32 %v752, %v761
        %v764 = vadd.f32 %v731, %v762
        %v765 = vadd.f32 %v732, %v763
        %766 = vset.pattern.permute.xlu0 21
        %767 = vperm.xlu0 %766, %v288
        %v768 = vpop.permute.xlu0 %767
        %v770 = vlaneseq
        %v771 = vshrl.u32 %v770, 7
        %v772 = vsub.s32 1, %v771
        %v773 = vrot.slane %v748, %v772
        %v774 = vlaneseq
        %v775 = vshrl.u32 %v774, 7
        %v776 = vsub.s32 1, %v775
        %v777 = vrot.slane %v749, %v776
        %v778 = vmul.f32 %v768, %v773
        %v779 = vmul.f32 %v768, %v777
        %v780 = vadd.f32 %v764, %v778
        %v781 = vadd.f32 %v765, %v779
        %782 = vset.pattern.permute.xlu0 22
        %783 = vperm.xlu0 %782, %v288
        %v784 = vpop.permute.xlu0 %783
        %v786 = vlaneseq
        %v787 = vshrl.u32 %v786, 7
        %v788 = vsub.s32 2, %v787
        %v789 = vrot.slane %v748, %v788
        %v790 = vlaneseq
        %v791 = vshrl.u32 %v790, 7
        %v792 = vsub.s32 2, %v791
        %v793 = vrot.slane %v749, %v792
        %v794 = vmul.f32 %v784, %v789
        %v795 = vmul.f32 %v784, %v793
        %v796 = vadd.f32 %v780, %v794
        %v797 = vadd.f32 %v781, %v795
        %798 = vset.pattern.permute.xlu0 23
        %799 = vperm.xlu0 %798, %v288
        %v800 = vpop.permute.xlu0 %799
        %v802 = vlaneseq
        %v803 = vshrl.u32 %v802, 7
        %v804 = vsub.s32 3, %v803
        %v805 = vrot.slane %v748, %v804
        %v806 = vlaneseq
        %v807 = vshrl.u32 %v806, 7
        %v808 = vsub.s32 3, %v807
        %v809 = vrot.slane %v749, %v808
        %v810 = vmul.f32 %v800, %v805
        %v811 = vmul.f32 %v800, %v809
        %v812 = vadd.f32 %v796, %v810
        %v813 = vadd.f32 %v797, %v811
        %814 = vrot.lane.b32.xlu0 %v292, 113
        %v815 = vpop.permute.xlu0 %814
        %816 = vrot.lane.b32.xlu0 %v300, 113
        %v817 = vpop.permute.xlu0 %816
        %vm818 = vcmp.lt.s32.totalorder %v307, 113
        %v819 = vsel %vm818, %v815, %v817
        %v820 = vsel %vm818, %v817, %v815
        %v821 = vlaneseq
        %v822 = vshrl.u32 %v821, 7
        %v823 = vsub.s32 6, %v822
        %v824 = vrot.slane %v284, %v823
        %v825 = vlaneseq
        %v826 = vshrl.u32 %v825, 7
        %v827 = vsub.s32 6, %v826
        %v828 = vrot.slane %v285, %v827
        %v829 = vmul.f32 %v819, %v824
        %v830 = vmul.f32 %v820, %v828
        %831 = vset.pattern.permute.xlu0 24
        %832 = vperm.xlu0 %831, %v288
        %v833 = vpop.permute.xlu0 %832
        %v835 = vlaneseq
        %v836 = vshrl.u32 %v835, 7
        %v837 = vsub.s32 0, %v836
        %v838 = vrot.slane %v829, %v837
        %v839 = vlaneseq
        %v840 = vshrl.u32 %v839, 7
        %v841 = vsub.s32 0, %v840
        %v842 = vrot.slane %v830, %v841
        %v843 = vmul.f32 %v833, %v838
        %v844 = vmul.f32 %v833, %v842
        %v845 = vadd.f32 %v812, %v843
        %v846 = vadd.f32 %v813, %v844
        %847 = vset.pattern.permute.xlu0 25
        %848 = vperm.xlu0 %847, %v288
        %v849 = vpop.permute.xlu0 %848
        %v851 = vlaneseq
        %v852 = vshrl.u32 %v851, 7
        %v853 = vsub.s32 1, %v852
        %v854 = vrot.slane %v829, %v853
        %v855 = vlaneseq
        %v856 = vshrl.u32 %v855, 7
        %v857 = vsub.s32 1, %v856
        %v858 = vrot.slane %v830, %v857
        %v859 = vmul.f32 %v849, %v854
        %v860 = vmul.f32 %v849, %v858
        %v861 = vadd.f32 %v845, %v859
        %v862 = vadd.f32 %v846, %v860
        %863 = vset.pattern.permute.xlu0 26
        %864 = vperm.xlu0 %863, %v288
        %v865 = vpop.permute.xlu0 %864
        %v867 = vlaneseq
        %v868 = vshrl.u32 %v867, 7
        %v869 = vsub.s32 2, %v868
        %v870 = vrot.slane %v829, %v869
        %v871 = vlaneseq
        %v872 = vshrl.u32 %v871, 7
        %v873 = vsub.s32 2, %v872
        %v874 = vrot.slane %v830, %v873
        %v875 = vmul.f32 %v865, %v870
        %v876 = vmul.f32 %v865, %v874
        %v877 = vadd.f32 %v861, %v875
        %v878 = vadd.f32 %v862, %v876
        %879 = vset.pattern.permute.xlu0 27
        %880 = vperm.xlu0 %879, %v288
        %v881 = vpop.permute.xlu0 %880
        %v883 = vlaneseq
        %v884 = vshrl.u32 %v883, 7
        %v885 = vsub.s32 3, %v884
        %v886 = vrot.slane %v829, %v885
        %v887 = vlaneseq
        %v888 = vshrl.u32 %v887, 7
        %v889 = vsub.s32 3, %v888
        %v890 = vrot.slane %v830, %v889
        %v891 = vmul.f32 %v881, %v886
        %v892 = vmul.f32 %v881, %v890
        %v893 = vadd.f32 %v877, %v891
        %v894 = vadd.f32 %v878, %v892
        %895 = vrot.lane.b32.xlu0 %v292, 112
        %v896 = vpop.permute.xlu0 %895
        %897 = vrot.lane.b32.xlu0 %v300, 112
        %v898 = vpop.permute.xlu0 %897
        %vm899 = vcmp.lt.s32.totalorder %v307, 112
        %v900 = vsel %vm899, %v896, %v898
        %v901 = vsel %vm899, %v898, %v896
        %v902 = vlaneseq
        %v903 = vshrl.u32 %v902, 7
        %v904 = vsub.s32 7, %v903
        %v905 = vrot.slane %v284, %v904
        %v906 = vlaneseq
        %v907 = vshrl.u32 %v906, 7
        %v908 = vsub.s32 7, %v907
        %v909 = vrot.slane %v285, %v908
        %v910 = vmul.f32 %v900, %v905
        %v911 = vmul.f32 %v901, %v909
        %912 = vset.pattern.permute.xlu0 28
        %913 = vperm.xlu0 %912, %v288
        %v914 = vpop.permute.xlu0 %913
        %v916 = vlaneseq
        %v917 = vshrl.u32 %v916, 7
        %v918 = vsub.s32 0, %v917
        %v919 = vrot.slane %v910, %v918
        %v920 = vlaneseq
        %v921 = vshrl.u32 %v920, 7
        %v922 = vsub.s32 0, %v921
        %v923 = vrot.slane %v911, %v922
        %v924 = vmul.f32 %v914, %v919
        %v925 = vmul.f32 %v914, %v923
        %v926 = vadd.f32 %v893, %v924
        %v927 = vadd.f32 %v894, %v925
        %928 = vset.pattern.permute.xlu0 29
        %929 = vperm.xlu0 %928, %v288
        %v930 = vpop.permute.xlu0 %929
        %v932 = vlaneseq
        %v933 = vshrl.u32 %v932, 7
        %v934 = vsub.s32 1, %v933
        %v935 = vrot.slane %v910, %v934
        %v936 = vlaneseq
        %v937 = vshrl.u32 %v936, 7
        %v938 = vsub.s32 1, %v937
        %v939 = vrot.slane %v911, %v938
        %v940 = vmul.f32 %v930, %v935
        %v941 = vmul.f32 %v930, %v939
        %v942 = vadd.f32 %v926, %v940
        %v943 = vadd.f32 %v927, %v941
        %944 = vset.pattern.permute.xlu0 30
        %945 = vperm.xlu0 %944, %v288
        %v946 = vpop.permute.xlu0 %945
        %v948 = vlaneseq
        %v949 = vshrl.u32 %v948, 7
        %v950 = vsub.s32 2, %v949
        %v951 = vrot.slane %v910, %v950
        %v952 = vlaneseq
        %v953 = vshrl.u32 %v952, 7
        %v954 = vsub.s32 2, %v953
        %v955 = vrot.slane %v911, %v954
        %v956 = vmul.f32 %v946, %v951
        %v957 = vmul.f32 %v946, %v955
        %v958 = vadd.f32 %v942, %v956
        %v959 = vadd.f32 %v943, %v957
        %960 = vset.pattern.permute.xlu0 31
        %961 = vperm.xlu0 %960, %v288
        %v962 = vpop.permute.xlu0 %961
        %v964 = vlaneseq
        %v965 = vshrl.u32 %v964, 7
        %v966 = vsub.s32 3, %v965
        %v967 = vrot.slane %v910, %v966
        %v968 = vlaneseq
        %v969 = vshrl.u32 %v968, 7
        %v970 = vsub.s32 3, %v969
        %v971 = vrot.slane %v911, %v970
        %v972 = vmul.f32 %v962, %v967
        %v973 = vmul.f32 %v962, %v971
        %v974 = vadd.f32 %v958, %v972
        %v975 = vadd.f32 %v959, %v973
        %976 = vrot.lane.b32.xlu0 %v292, 111
        %v977 = vpop.permute.xlu0 %976
        %978 = vrot.lane.b32.xlu0 %v300, 111
        %v979 = vpop.permute.xlu0 %978
        %vm980 = vcmp.lt.s32.totalorder %v307, 111
        %v981 = vsel %vm980, %v977, %v979
        %v982 = vsel %vm980, %v979, %v977
        %v983 = vlaneseq
        %v984 = vshrl.u32 %v983, 7
        %v985 = vsub.s32 0, %v984
        %v986 = vrot.slane %v286, %v985
        %v987 = vlaneseq
        %v988 = vshrl.u32 %v987, 7
        %v989 = vsub.s32 0, %v988
        %v990 = vrot.slane %v287, %v989
        %v991 = vmul.f32 %v981, %v986
        %v992 = vmul.f32 %v982, %v990
        %993 = vset.pattern.permute.xlu0 32
        %994 = vperm.xlu0 %993, %v288
        %v995 = vpop.permute.xlu0 %994
        %v997 = vlaneseq
        %v998 = vshrl.u32 %v997, 7
        %v999 = vsub.s32 0, %v998
        %v1000 = vrot.slane %v991, %v999
        %v1001 = vlaneseq
        %v1002 = vshrl.u32 %v1001, 7
        %v1003 = vsub.s32 0, %v1002
        %v1004 = vrot.slane %v992, %v1003
        %v1005 = vmul.f32 %v995, %v1000
        %v1006 = vmul.f32 %v995, %v1004
        %v1007 = vadd.f32 %v974, %v1005
        %v1008 = vadd.f32 %v975, %v1006
        %1009 = vset.pattern.permute.xlu0 33
        %1010 = vperm.xlu0 %1009, %v288
        %v1011 = vpop.permute.xlu0 %1010
        %v1013 = vlaneseq
        %v1014 = vshrl.u32 %v1013, 7
        %v1015 = vsub.s32 1, %v1014
        %v1016 = vrot.slane %v991, %v1015
        %v1017 = vlaneseq
        %v1018 = vshrl.u32 %v1017, 7
        %v1019 = vsub.s32 1, %v1018
        %v1020 = vrot.slane %v992, %v1019
        %v1021 = vmul.f32 %v1011, %v1016
        %v1022 = vmul.f32 %v1011, %v1020
        %v1023 = vadd.f32 %v1007, %v1021
        %v1024 = vadd.f32 %v1008, %v1022
        %1025 = vset.pattern.permute.xlu0 34
        %1026 = vperm.xlu0 %1025, %v288
        %v1027 = vpop.permute.xlu0 %1026
        %v1029 = vlaneseq
        %v1030 = vshrl.u32 %v1029, 7
        %v1031 = vsub.s32 2, %v1030
        %v1032 = vrot.slane %v991, %v1031
        %v1033 = vlaneseq
        %v1034 = vshrl.u32 %v1033, 7
        %v1035 = vsub.s32 2, %v1034
        %v1036 = vrot.slane %v992, %v1035
        %v1037 = vmul.f32 %v1027, %v1032
        %v1038 = vmul.f32 %v1027, %v1036
        %v1039 = vadd.f32 %v1023, %v1037
        %v1040 = vadd.f32 %v1024, %v1038
        %1041 = vset.pattern.permute.xlu0 35
        %1042 = vperm.xlu0 %1041, %v288
        %v1043 = vpop.permute.xlu0 %1042
        %v1045 = vlaneseq
        %v1046 = vshrl.u32 %v1045, 7
        %v1047 = vsub.s32 3, %v1046
        %v1048 = vrot.slane %v991, %v1047
        %v1049 = vlaneseq
        %v1050 = vshrl.u32 %v1049, 7
        %v1051 = vsub.s32 3, %v1050
        %v1052 = vrot.slane %v992, %v1051
        %v1053 = vmul.f32 %v1043, %v1048
        %v1054 = vmul.f32 %v1043, %v1052
        %v1055 = vadd.f32 %v1039, %v1053
        %v1056 = vadd.f32 %v1040, %v1054
        %v1057 = vmax.f32 %v1055, 0.0
        %v1058 = vmax.f32 %v1056, 0.0
        %1060 = vset.pattern.permute.xlu0 0
        %1061 = vperm.xlu0 %1060, %v291
        %v1062 = vpop.permute.xlu0 %1061
        %v1064 = vadd.f32 %v1062, 0.0
        %1065 = vrot.lane.b32.xlu0 %v1057, 17
        %v1066 = vpop.permute.xlu0 %1065
        %1067 = vrot.lane.b32.xlu0 %v1058, 17
        %v1068 = vpop.permute.xlu0 %1067
        %v1069 = vsel %vm308, %v1066, %v1068
        %v1070 = vsel %vm308, %v1068, %v1066
        %v1071 = vmul.f32 %v1070, %v314
        %v1072 = vmul.f32 %v1069, %v318
        %1074 = vset.pattern.permute.xlu0 0
        %1075 = vperm.xlu0 %1074, %v289
        %v1076 = vpop.permute.xlu0 %1075
        %v1078 = vlaneseq
        %v1079 = vshrl.u32 %v1078, 7
        %v1080 = vsub.s32 0, %v1079
        %v1081 = vrot.slane %v1071, %v1080
        %v1082 = vlaneseq
        %v1083 = vshrl.u32 %v1082, 7
        %v1084 = vsub.s32 0, %v1083
        %v1085 = vrot.slane %v1072, %v1084
        %v1086 = vmul.f32 %v1076, %v1081
        %v1087 = vmul.f32 %v1076, %v1085
        %v1088 = vadd.f32 %v1064, %v1086
        %v1089 = vadd.f32 %v1064, %v1087
        %1090 = vset.pattern.permute.xlu0 1
        %1091 = vperm.xlu0 %1090, %v289
        %v1092 = vpop.permute.xlu0 %1091
        %v1094 = vlaneseq
        %v1095 = vshrl.u32 %v1094, 7
        %v1096 = vsub.s32 1, %v1095
        %v1097 = vrot.slane %v1071, %v1096
        %v1098 = vlaneseq
        %v1099 = vshrl.u32 %v1098, 7
        %v1100 = vsub.s32 1, %v1099
        %v1101 = vrot.slane %v1072, %v1100
        %v1102 = vmul.f32 %v1092, %v1097
        %v1103 = vmul.f32 %v1092, %v1101
        %v1104 = vadd.f32 %v1088, %v1102
        %v1105 = vadd.f32 %v1089, %v1103
        %1106 = vset.pattern.permute.xlu0 2
        %1107 = vperm.xlu0 %1106, %v289
        %v1108 = vpop.permute.xlu0 %1107
        %v1110 = vlaneseq
        %v1111 = vshrl.u32 %v1110, 7
        %v1112 = vsub.s32 2, %v1111
        %v1113 = vrot.slane %v1071, %v1112
        %v1114 = vlaneseq
        %v1115 = vshrl.u32 %v1114, 7
        %v1116 = vsub.s32 2, %v1115
        %v1117 = vrot.slane %v1072, %v1116
        %v1118 = vmul.f32 %v1108, %v1113
        %v1119 = vmul.f32 %v1108, %v1117
        %v1120 = vadd.f32 %v1104, %v1118
        %v1121 = vadd.f32 %v1105, %v1119
        %1122 = vset.pattern.permute.xlu0 3
        %1123 = vperm.xlu0 %1122, %v289
        %v1124 = vpop.permute.xlu0 %1123
        %v1126 = vlaneseq
        %v1127 = vshrl.u32 %v1126, 7
        %v1128 = vsub.s32 3, %v1127
        %v1129 = vrot.slane %v1071, %v1128
        %v1130 = vlaneseq
        %v1131 = vshrl.u32 %v1130, 7
        %v1132 = vsub.s32 3, %v1131
        %v1133 = vrot.slane %v1072, %v1132
        %v1134 = vmul.f32 %v1124, %v1129
        %v1135 = vmul.f32 %v1124, %v1133
        %v1136 = vadd.f32 %v1120, %v1134
        %v1137 = vadd.f32 %v1121, %v1135
        %1138 = vrot.lane.b32.xlu0 %v1057, 16
        %v1139 = vpop.permute.xlu0 %1138
        %1140 = vrot.lane.b32.xlu0 %v1058, 16
        %v1141 = vpop.permute.xlu0 %1140
        %v1142 = vsel %vm390, %v1139, %v1141
        %v1143 = vsel %vm390, %v1141, %v1139
        %v1144 = vmul.f32 %v1143, %v396
        %v1145 = vmul.f32 %v1142, %v400
        %1146 = vset.pattern.permute.xlu0 4
        %1147 = vperm.xlu0 %1146, %v289
        %v1148 = vpop.permute.xlu0 %1147
        %v1150 = vlaneseq
        %v1151 = vshrl.u32 %v1150, 7
        %v1152 = vsub.s32 0, %v1151
        %v1153 = vrot.slane %v1144, %v1152
        %v1154 = vlaneseq
        %v1155 = vshrl.u32 %v1154, 7
        %v1156 = vsub.s32 0, %v1155
        %v1157 = vrot.slane %v1145, %v1156
        %v1158 = vmul.f32 %v1148, %v1153
        %v1159 = vmul.f32 %v1148, %v1157
        %v1160 = vadd.f32 %v1136, %v1158
        %v1161 = vadd.f32 %v1137, %v1159
        %1162 = vset.pattern.permute.xlu0 5
        %1163 = vperm.xlu0 %1162, %v289
        %v1164 = vpop.permute.xlu0 %1163
        %v1166 = vlaneseq
        %v1167 = vshrl.u32 %v1166, 7
        %v1168 = vsub.s32 1, %v1167
        %v1169 = vrot.slane %v1144, %v1168
        %v1170 = vlaneseq
        %v1171 = vshrl.u32 %v1170, 7
        %v1172 = vsub.s32 1, %v1171
        %v1173 = vrot.slane %v1145, %v1172
        %v1174 = vmul.f32 %v1164, %v1169
        %v1175 = vmul.f32 %v1164, %v1173
        %v1176 = vadd.f32 %v1160, %v1174
        %v1177 = vadd.f32 %v1161, %v1175
        %1178 = vset.pattern.permute.xlu0 6
        %1179 = vperm.xlu0 %1178, %v289
        %v1180 = vpop.permute.xlu0 %1179
        %v1182 = vlaneseq
        %v1183 = vshrl.u32 %v1182, 7
        %v1184 = vsub.s32 2, %v1183
        %v1185 = vrot.slane %v1144, %v1184
        %v1186 = vlaneseq
        %v1187 = vshrl.u32 %v1186, 7
        %v1188 = vsub.s32 2, %v1187
        %v1189 = vrot.slane %v1145, %v1188
        %v1190 = vmul.f32 %v1180, %v1185
        %v1191 = vmul.f32 %v1180, %v1189
        %v1192 = vadd.f32 %v1176, %v1190
        %v1193 = vadd.f32 %v1177, %v1191
        %1194 = vset.pattern.permute.xlu0 7
        %1195 = vperm.xlu0 %1194, %v289
        %v1196 = vpop.permute.xlu0 %1195
        %v1198 = vlaneseq
        %v1199 = vshrl.u32 %v1198, 7
        %v1200 = vsub.s32 3, %v1199
        %v1201 = vrot.slane %v1144, %v1200
        %v1202 = vlaneseq
        %v1203 = vshrl.u32 %v1202, 7
        %v1204 = vsub.s32 3, %v1203
        %v1205 = vrot.slane %v1145, %v1204
        %v1206 = vmul.f32 %v1196, %v1201
        %v1207 = vmul.f32 %v1196, %v1205
        %v1208 = vadd.f32 %v1192, %v1206
        %v1209 = vadd.f32 %v1193, %v1207
        %1210 = vrot.lane.b32.xlu0 %v1057, 15
        %v1211 = vpop.permute.xlu0 %1210
        %1212 = vrot.lane.b32.xlu0 %v1058, 15
        %v1213 = vpop.permute.xlu0 %1212
        %v1214 = vsel %vm471, %v1211, %v1213
        %v1215 = vsel %vm471, %v1213, %v1211
        %v1216 = vmul.f32 %v1215, %v477
        %v1217 = vmul.f32 %v1214, %v481
        %1218 = vset.pattern.permute.xlu0 8
        %1219 = vperm.xlu0 %1218, %v289
        %v1220 = vpop.permute.xlu0 %1219
        %v1222 = vlaneseq
        %v1223 = vshrl.u32 %v1222, 7
        %v1224 = vsub.s32 0, %v1223
        %v1225 = vrot.slane %v1216, %v1224
        %v1226 = vlaneseq
        %v1227 = vshrl.u32 %v1226, 7
        %v1228 = vsub.s32 0, %v1227
        %v1229 = vrot.slane %v1217, %v1228
        %v1230 = vmul.f32 %v1220, %v1225
        %v1231 = vmul.f32 %v1220, %v1229
        %v1232 = vadd.f32 %v1208, %v1230
        %v1233 = vadd.f32 %v1209, %v1231
        %1234 = vset.pattern.permute.xlu0 9
        %1235 = vperm.xlu0 %1234, %v289
        %v1236 = vpop.permute.xlu0 %1235
        %v1238 = vlaneseq
        %v1239 = vshrl.u32 %v1238, 7
        %v1240 = vsub.s32 1, %v1239
        %v1241 = vrot.slane %v1216, %v1240
        %v1242 = vlaneseq
        %v1243 = vshrl.u32 %v1242, 7
        %v1244 = vsub.s32 1, %v1243
        %v1245 = vrot.slane %v1217, %v1244
        %v1246 = vmul.f32 %v1236, %v1241
        %v1247 = vmul.f32 %v1236, %v1245
        %v1248 = vadd.f32 %v1232, %v1246
        %v1249 = vadd.f32 %v1233, %v1247
        %1250 = vset.pattern.permute.xlu0 10
        %1251 = vperm.xlu0 %1250, %v289
        %v1252 = vpop.permute.xlu0 %1251
        %v1254 = vlaneseq
        %v1255 = vshrl.u32 %v1254, 7
        %v1256 = vsub.s32 2, %v1255
        %v1257 = vrot.slane %v1216, %v1256
        %v1258 = vlaneseq
        %v1259 = vshrl.u32 %v1258, 7
        %v1260 = vsub.s32 2, %v1259
        %v1261 = vrot.slane %v1217, %v1260
        %v1262 = vmul.f32 %v1252, %v1257
        %v1263 = vmul.f32 %v1252, %v1261
        %v1264 = vadd.f32 %v1248, %v1262
        %v1265 = vadd.f32 %v1249, %v1263
        %1266 = vset.pattern.permute.xlu0 11
        %1267 = vperm.xlu0 %1266, %v289
        %v1268 = vpop.permute.xlu0 %1267
        %v1270 = vlaneseq
        %v1271 = vshrl.u32 %v1270, 7
        %v1272 = vsub.s32 3, %v1271
        %v1273 = vrot.slane %v1216, %v1272
        %v1274 = vlaneseq
        %v1275 = vshrl.u32 %v1274, 7
        %v1276 = vsub.s32 3, %v1275
        %v1277 = vrot.slane %v1217, %v1276
        %v1278 = vmul.f32 %v1268, %v1273
        %v1279 = vmul.f32 %v1268, %v1277
        %v1280 = vadd.f32 %v1264, %v1278
        %v1281 = vadd.f32 %v1265, %v1279
        %1282 = vrot.lane.b32.xlu0 %v1057, 1
        %v1283 = vpop.permute.xlu0 %1282
        %1284 = vrot.lane.b32.xlu0 %v1058, 1
        %v1285 = vpop.permute.xlu0 %1284
        %v1286 = vsel %vm552, %v1283, %v1285
        %v1287 = vsel %vm552, %v1285, %v1283
        %v1288 = vmul.f32 %v1287, %v558
        %v1289 = vmul.f32 %v1286, %v562
        %1290 = vset.pattern.permute.xlu0 12
        %1291 = vperm.xlu0 %1290, %v289
        %v1292 = vpop.permute.xlu0 %1291
        %v1294 = vlaneseq
        %v1295 = vshrl.u32 %v1294, 7
        %v1296 = vsub.s32 0, %v1295
        %v1297 = vrot.slane %v1288, %v1296
        %v1298 = vlaneseq
        %v1299 = vshrl.u32 %v1298, 7
        %v1300 = vsub.s32 0, %v1299
        %v1301 = vrot.slane %v1289, %v1300
        %v1302 = vmul.f32 %v1292, %v1297
        %v1303 = vmul.f32 %v1292, %v1301
        %v1304 = vadd.f32 %v1280, %v1302
        %v1305 = vadd.f32 %v1281, %v1303
        %1306 = vset.pattern.permute.xlu0 13
        %1307 = vperm.xlu0 %1306, %v289
        %v1308 = vpop.permute.xlu0 %1307
        %v1310 = vlaneseq
        %v1311 = vshrl.u32 %v1310, 7
        %v1312 = vsub.s32 1, %v1311
        %v1313 = vrot.slane %v1288, %v1312
        %v1314 = vlaneseq
        %v1315 = vshrl.u32 %v1314, 7
        %v1316 = vsub.s32 1, %v1315
        %v1317 = vrot.slane %v1289, %v1316
        %v1318 = vmul.f32 %v1308, %v1313
        %v1319 = vmul.f32 %v1308, %v1317
        %v1320 = vadd.f32 %v1304, %v1318
        %v1321 = vadd.f32 %v1305, %v1319
        %1322 = vset.pattern.permute.xlu0 14
        %1323 = vperm.xlu0 %1322, %v289
        %v1324 = vpop.permute.xlu0 %1323
        %v1326 = vlaneseq
        %v1327 = vshrl.u32 %v1326, 7
        %v1328 = vsub.s32 2, %v1327
        %v1329 = vrot.slane %v1288, %v1328
        %v1330 = vlaneseq
        %v1331 = vshrl.u32 %v1330, 7
        %v1332 = vsub.s32 2, %v1331
        %v1333 = vrot.slane %v1289, %v1332
        %v1334 = vmul.f32 %v1324, %v1329
        %v1335 = vmul.f32 %v1324, %v1333
        %v1336 = vadd.f32 %v1320, %v1334
        %v1337 = vadd.f32 %v1321, %v1335
        %1338 = vset.pattern.permute.xlu0 15
        %1339 = vperm.xlu0 %1338, %v289
        %v1340 = vpop.permute.xlu0 %1339
        %v1342 = vlaneseq
        %v1343 = vshrl.u32 %v1342, 7
        %v1344 = vsub.s32 3, %v1343
        %v1345 = vrot.slane %v1288, %v1344
        %v1346 = vlaneseq
        %v1347 = vshrl.u32 %v1346, 7
        %v1348 = vsub.s32 3, %v1347
        %v1349 = vrot.slane %v1289, %v1348
        %v1350 = vmul.f32 %v1340, %v1345
        %v1351 = vmul.f32 %v1340, %v1349
        %v1352 = vadd.f32 %v1336, %v1350
        %v1353 = vadd.f32 %v1337, %v1351
        %1354 = vset.pattern.permute.xlu0 16
        %1355 = vperm.xlu0 %1354, %v289
        %v1356 = vpop.permute.xlu0 %1355
        %v1358 = vlaneseq
        %v1359 = vshrl.u32 %v1358, 7
        %v1360 = vsub.s32 0, %v1359
        %v1361 = vrot.slane %v1057, %v1360
        %v1362 = vlaneseq
        %v1363 = vshrl.u32 %v1362, 7
        %v1364 = vsub.s32 0, %v1363
        %v1365 = vrot.slane %v1058, %v1364
        %v1366 = vmul.f32 %v1356, %v1361
        %v1367 = vmul.f32 %v1356, %v1365
        %v1368 = vadd.f32 %v1352, %v1366
        %v1369 = vadd.f32 %v1353, %v1367
        %1370 = vset.pattern.permute.xlu0 17
        %1371 = vperm.xlu0 %1370, %v289
        %v1372 = vpop.permute.xlu0 %1371
        %v1374 = vlaneseq
        %v1375 = vshrl.u32 %v1374, 7
        %v1376 = vsub.s32 1, %v1375
        %v1377 = vrot.slane %v1057, %v1376
        %v1378 = vlaneseq
        %v1379 = vshrl.u32 %v1378, 7
        %v1380 = vsub.s32 1, %v1379
        %v1381 = vrot.slane %v1058, %v1380
        %v1382 = vmul.f32 %v1372, %v1377
        %v1383 = vmul.f32 %v1372, %v1381
        %v1384 = vadd.f32 %v1368, %v1382
        %v1385 = vadd.f32 %v1369, %v1383
        %1386 = vset.pattern.permute.xlu0 18
        %1387 = vperm.xlu0 %1386, %v289
        %v1388 = vpop.permute.xlu0 %1387
        %v1390 = vlaneseq
        %v1391 = vshrl.u32 %v1390, 7
        %v1392 = vsub.s32 2, %v1391
        %v1393 = vrot.slane %v1057, %v1392
        %v1394 = vlaneseq
        %v1395 = vshrl.u32 %v1394, 7
        %v1396 = vsub.s32 2, %v1395
        %v1397 = vrot.slane %v1058, %v1396
        %v1398 = vmul.f32 %v1388, %v1393
        %v1399 = vmul.f32 %v1388, %v1397
        %v1400 = vadd.f32 %v1384, %v1398
        %v1401 = vadd.f32 %v1385, %v1399
        %1402 = vset.pattern.permute.xlu0 19
        %1403 = vperm.xlu0 %1402, %v289
        %v1404 = vpop.permute.xlu0 %1403
        %v1406 = vlaneseq
        %v1407 = vshrl.u32 %v1406, 7
        %v1408 = vsub.s32 3, %v1407
        %v1409 = vrot.slane %v1057, %v1408
        %v1410 = vlaneseq
        %v1411 = vshrl.u32 %v1410, 7
        %v1412 = vsub.s32 3, %v1411
        %v1413 = vrot.slane %v1058, %v1412
        %v1414 = vmul.f32 %v1404, %v1409
        %v1415 = vmul.f32 %v1404, %v1413
        %v1416 = vadd.f32 %v1400, %v1414
        %v1417 = vadd.f32 %v1401, %v1415
        %1418 = vrot.lane.b32.xlu0 %v1057, 127
        %v1419 = vpop.permute.xlu0 %1418
        %1420 = vrot.lane.b32.xlu0 %v1058, 127
        %v1421 = vpop.permute.xlu0 %1420
        %v1422 = vsel %vm737, %v1419, %v1421
        %v1423 = vsel %vm737, %v1421, %v1419
        %v1424 = vmul.f32 %v1422, %v743
        %v1425 = vmul.f32 %v1423, %v747
        %1426 = vset.pattern.permute.xlu0 20
        %1427 = vperm.xlu0 %1426, %v289
        %v1428 = vpop.permute.xlu0 %1427
        %v1430 = vlaneseq
        %v1431 = vshrl.u32 %v1430, 7
        %v1432 = vsub.s32 0, %v1431
        %v1433 = vrot.slane %v1424, %v1432
        %v1434 = vlaneseq
        %v1435 = vshrl.u32 %v1434, 7
        %v1436 = vsub.s32 0, %v1435
        %v1437 = vrot.slane %v1425, %v1436
        %v1438 = vmul.f32 %v1428, %v1433
        %v1439 = vmul.f32 %v1428, %v1437
        %v1440 = vadd.f32 %v1416, %v1438
        %v1441 = vadd.f32 %v1417, %v1439
        %1442 = vset.pattern.permute.xlu0 21
        %1443 = vperm.xlu0 %1442, %v289
        %v1444 = vpop.permute.xlu0 %1443
        %v1446 = vlaneseq
        %v1447 = vshrl.u32 %v1446, 7
        %v1448 = vsub.s32 1, %v1447
        %v1449 = vrot.slane %v1424, %v1448
        %v1450 = vlaneseq
        %v1451 = vshrl.u32 %v1450, 7
        %v1452 = vsub.s32 1, %v1451
        %v1453 = vrot.slane %v1425, %v1452
        %v1454 = vmul.f32 %v1444, %v1449
        %v1455 = vmul.f32 %v1444, %v1453
        %v1456 = vadd.f32 %v1440, %v1454
        %v1457 = vadd.f32 %v1441, %v1455
        %1458 = vset.pattern.permute.xlu0 22
        %1459 = vperm.xlu0 %1458, %v289
        %v1460 = vpop.permute.xlu0 %1459
        %v1462 = vlaneseq
        %v1463 = vshrl.u32 %v1462, 7
        %v1464 = vsub.s32 2, %v1463
        %v1465 = vrot.slane %v1424, %v1464
        %v1466 = vlaneseq
        %v1467 = vshrl.u32 %v1466, 7
        %v1468 = vsub.s32 2, %v1467
        %v1469 = vrot.slane %v1425, %v1468
        %v1470 = vmul.f32 %v1460, %v1465
        %v1471 = vmul.f32 %v1460, %v1469
        %v1472 = vadd.f32 %v1456, %v1470
        %v1473 = vadd.f32 %v1457, %v1471
        %1474 = vset.pattern.permute.xlu0 23
        %1475 = vperm.xlu0 %1474, %v289
        %v1476 = vpop.permute.xlu0 %1475
        %v1478 = vlaneseq
        %v1479 = vshrl.u32 %v1478, 7
        %v1480 = vsub.s32 3, %v1479
        %v1481 = vrot.slane %v1424, %v1480
        %v1482 = vlaneseq
        %v1483 = vshrl.u32 %v1482, 7
        %v1484 = vsub.s32 3, %v1483
        %v1485 = vrot.slane %v1425, %v1484
        %v1486 = vmul.f32 %v1476, %v1481
        %v1487 = vmul.f32 %v1476, %v1485
        %v1488 = vadd.f32 %v1472, %v1486
        %v1489 = vadd.f32 %v1473, %v1487
        %1490 = vrot.lane.b32.xlu0 %v1057, 113
        %v1491 = vpop.permute.xlu0 %1490
        %1492 = vrot.lane.b32.xlu0 %v1058, 113
        %v1493 = vpop.permute.xlu0 %1492
        %v1494 = vsel %vm818, %v1491, %v1493
        %v1495 = vsel %vm818, %v1493, %v1491
        %v1496 = vmul.f32 %v1494, %v824
        %v1497 = vmul.f32 %v1495, %v828
        %1498 = vset.pattern.permute.xlu0 24
        %1499 = vperm.xlu0 %1498, %v289
        %v1500 = vpop.permute.xlu0 %1499
        %v1502 = vlaneseq
        %v1503 = vshrl.u32 %v1502, 7
        %v1504 = vsub.s32 0, %v1503
        %v1505 = vrot.slane %v1496, %v1504
        %v1506 = vlaneseq
        %v1507 = vshrl.u32 %v1506, 7
        %v1508 = vsub.s32 0, %v1507
        %v1509 = vrot.slane %v1497, %v1508
        %v1510 = vmul.f32 %v1500, %v1505
        %v1511 = vmul.f32 %v1500, %v1509
        %v1512 = vadd.f32 %v1488, %v1510
        %v1513 = vadd.f32 %v1489, %v1511
        %1514 = vset.pattern.permute.xlu0 25
        %1515 = vperm.xlu0 %1514, %v289
        %v1516 = vpop.permute.xlu0 %1515
        %v1518 = vlaneseq
        %v1519 = vshrl.u32 %v1518, 7
        %v1520 = vsub.s32 1, %v1519
        %v1521 = vrot.slane %v1496, %v1520
        %v1522 = vlaneseq
        %v1523 = vshrl.u32 %v1522, 7
        %v1524 = vsub.s32 1, %v1523
        %v1525 = vrot.slane %v1497, %v1524
        %v1526 = vmul.f32 %v1516, %v1521
        %v1527 = vmul.f32 %v1516, %v1525
        %v1528 = vadd.f32 %v1512, %v1526
        %v1529 = vadd.f32 %v1513, %v1527
        %1530 = vset.pattern.permute.xlu0 26
        %1531 = vperm.xlu0 %1530, %v289
        %v1532 = vpop.permute.xlu0 %1531
        %v1534 = vlaneseq
        %v1535 = vshrl.u32 %v1534, 7
        %v1536 = vsub.s32 2, %v1535
        %v1537 = vrot.slane %v1496, %v1536
        %v1538 = vlaneseq
        %v1539 = vshrl.u32 %v1538, 7
        %v1540 = vsub.s32 2, %v1539
        %v1541 = vrot.slane %v1497, %v1540
        %v1542 = vmul.f32 %v1532, %v1537
        %v1543 = vmul.f32 %v1532, %v1541
        %v1544 = vadd.f32 %v1528, %v1542
        %v1545 = vadd.f32 %v1529, %v1543
        %1546 = vset.pattern.permute.xlu0 27
        %1547 = vperm.xlu0 %1546, %v289
        %v1548 = vpop.permute.xlu0 %1547
        %v1550 = vlaneseq
        %v1551 = vshrl.u32 %v1550, 7
        %v1552 = vsub.s32 3, %v1551
        %v1553 = vrot.slane %v1496, %v1552
        %v1554 = vlaneseq
        %v1555 = vshrl.u32 %v1554, 7
        %v1556 = vsub.s32 3, %v1555
        %v1557 = vrot.slane %v1497, %v1556
        %v1558 = vmul.f32 %v1548, %v1553
        %v1559 = vmul.f32 %v1548, %v1557
        %v1560 = vadd.f32 %v1544, %v1558
        %v1561 = vadd.f32 %v1545, %v1559
        %1562 = vrot.lane.b32.xlu0 %v1057, 112
        %v1563 = vpop.permute.xlu0 %1562
        %1564 = vrot.lane.b32.xlu0 %v1058, 112
        %v1565 = vpop.permute.xlu0 %1564
        %v1566 = vsel %vm899, %v1563, %v1565
        %v1567 = vsel %vm899, %v1565, %v1563
        %v1568 = vmul.f32 %v1566, %v905
        %v1569 = vmul.f32 %v1567, %v909
        %1570 = vset.pattern.permute.xlu0 28
        %1571 = vperm.xlu0 %1570, %v289
        %v1572 = vpop.permute.xlu0 %1571
        %v1574 = vlaneseq
        %v1575 = vshrl.u32 %v1574, 7
        %v1576 = vsub.s32 0, %v1575
        %v1577 = vrot.slane %v1568, %v1576
        %v1578 = vlaneseq
        %v1579 = vshrl.u32 %v1578, 7
        %v1580 = vsub.s32 0, %v1579
        %v1581 = vrot.slane %v1569, %v1580
        %v1582 = vmul.f32 %v1572, %v1577
        %v1583 = vmul.f32 %v1572, %v1581
        %v1584 = vadd.f32 %v1560, %v1582
        %v1585 = vadd.f32 %v1561, %v1583
        %1586 = vset.pattern.permute.xlu0 29
        %1587 = vperm.xlu0 %1586, %v289
        %v1588 = vpop.permute.xlu0 %1587
        %v1590 = vlaneseq
        %v1591 = vshrl.u32 %v1590, 7
        %v1592 = vsub.s32 1, %v1591
        %v1593 = vrot.slane %v1568, %v1592
        %v1594 = vlaneseq
        %v1595 = vshrl.u32 %v1594, 7
        %v1596 = vsub.s32 1, %v1595
        %v1597 = vrot.slane %v1569, %v1596
        %v1598 = vmul.f32 %v1588, %v1593
        %v1599 = vmul.f32 %v1588, %v1597
        %v1600 = vadd.f32 %v1584, %v1598
        %v1601 = vadd.f32 %v1585, %v1599
        %1602 = vset.pattern.permute.xlu0 30
        %1603 = vperm.xlu0 %1602, %v289
        %v1604 = vpop.permute.xlu0 %1603
        %v1606 = vlaneseq
        %v1607 = vshrl.u32 %v1606, 7
        %v1608 = vsub.s32 2, %v1607
        %v1609 = vrot.slane %v1568, %v1608
        %v1610 = vlaneseq
        %v1611 = vshrl.u32 %v1610, 7
        %v1612 = vsub.s32 2, %v1611
        %v1613 = vrot.slane %v1569, %v1612
        %v1614 = vmul.f32 %v1604, %v1609
        %v1615 = vmul.f32 %v1604, %v1613
        %v1616 = vadd.f32 %v1600, %v1614
        %v1617 = vadd.f32 %v1601, %v1615
        %1618 = vset.pattern.permute.xlu0 31
        %1619 = vperm.xlu0 %1618, %v289
        %v1620 = vpop.permute.xlu0 %1619
        %v1622 = vlaneseq
        %v1623 = vshrl.u32 %v1622, 7
        %v1624 = vsub.s32 3, %v1623
        %v1625 = vrot.slane %v1568, %v1624
        %v1626 = vlaneseq
        %v1627 = vshrl.u32 %v1626, 7
        %v1628 = vsub.s32 3, %v1627
        %v1629 = vrot.slane %v1569, %v1628
        %v1630 = vmul.f32 %v1620, %v1625
        %v1631 = vmul.f32 %v1620, %v1629
        %v1632 = vadd.f32 %v1616, %v1630
        %v1633 = vadd.f32 %v1617, %v1631
        %1634 = vrot.lane.b32.xlu0 %v1057, 111
        %v1635 = vpop.permute.xlu0 %1634
        %1636 = vrot.lane.b32.xlu0 %v1058, 111
        %v1637 = vpop.permute.xlu0 %1636
        %v1638 = vsel %vm980, %v1635, %v1637
        %v1639 = vsel %vm980, %v1637, %v1635
        %v1640 = vmul.f32 %v1638, %v986
        %v1641 = vmul.f32 %v1639, %v990
        %1642 = vset.pattern.permute.xlu0 32
        %1643 = vperm.xlu0 %1642, %v289
        %v1644 = vpop.permute.xlu0 %1643
        %v1646 = vlaneseq
        %v1647 = vshrl.u32 %v1646, 7
        %v1648 = vsub.s32 0, %v1647
        %v1649 = vrot.slane %v1640, %v1648
        %v1650 = vlaneseq
        %v1651 = vshrl.u32 %v1650, 7
        %v1652 = vsub.s32 0, %v1651
        %v1653 = vrot.slane %v1641, %v1652
        %v1654 = vmul.f32 %v1644, %v1649
        %v1655 = vmul.f32 %v1644, %v1653
        %v1656 = vadd.f32 %v1632, %v1654
        %v1657 = vadd.f32 %v1633, %v1655
        %1658 = vset.pattern.permute.xlu0 33
        %1659 = vperm.xlu0 %1658, %v289
        %v1660 = vpop.permute.xlu0 %1659
        %v1662 = vlaneseq
        %v1663 = vshrl.u32 %v1662, 7
        %v1664 = vsub.s32 1, %v1663
        %v1665 = vrot.slane %v1640, %v1664
        %v1666 = vlaneseq
        %v1667 = vshrl.u32 %v1666, 7
        %v1668 = vsub.s32 1, %v1667
        %v1669 = vrot.slane %v1641, %v1668
        %v1670 = vmul.f32 %v1660, %v1665
        %v1671 = vmul.f32 %v1660, %v1669
        %v1672 = vadd.f32 %v1656, %v1670
        %v1673 = vadd.f32 %v1657, %v1671
        %1674 = vset.pattern.permute.xlu0 34
        %1675 = vperm.xlu0 %1674, %v289
        %v1676 = vpop.permute.xlu0 %1675
        %v1678 = vlaneseq
        %v1679 = vshrl.u32 %v1678, 7
        %v1680 = vsub.s32 2, %v1679
        %v1681 = vrot.slane %v1640, %v1680
        %v1682 = vlaneseq
        %v1683 = vshrl.u32 %v1682, 7
        %v1684 = vsub.s32 2, %v1683
        %v1685 = vrot.slane %v1641, %v1684
        %v1686 = vmul.f32 %v1676, %v1681
        %v1687 = vmul.f32 %v1676, %v1685
        %v1688 = vadd.f32 %v1672, %v1686
        %v1689 = vadd.f32 %v1673, %v1687
        %1690 = vset.pattern.permute.xlu0 35
        %1691 = vperm.xlu0 %1690, %v289
        %v1692 = vpop.permute.xlu0 %1691
        %v1694 = vlaneseq
        %v1695 = vshrl.u32 %v1694, 7
        %v1696 = vsub.s32 3, %v1695
        %v1697 = vrot.slane %v1640, %v1696
        %v1698 = vlaneseq
        %v1699 = vshrl.u32 %v1698, 7
        %v1700 = vsub.s32 3, %v1699
        %v1701 = vrot.slane %v1641, %v1700
        %v1702 = vmul.f32 %v1692, %v1697
        %v1703 = vmul.f32 %v1692, %v1701
        %v1704 = vadd.f32 %v1688, %v1702
        %v1705 = vadd.f32 %v1689, %v1703
        %v1707 = vcombine.high %v283, %v283
        %v1709 = vadd.f32 %v1704, %v283
        %v1710 = vadd.f32 %v1705, %v1707
        %v1713 = vcombine.low %v1709, %v1710
        %1715 = vst [vmem:[%s282] sm:$0xff] %v1713
        %s1716 = sand.u32 %s163, 1
        %s1717 = scalar_lea.sflag [#allocation4], %s1716
        %s1718 = sand.u32 %s163, 1
        %s1719 = smul.addr %s1718, 8
        %s1720 = scalar_lea.vmem [#allocation7], %s1719
        // Predicated region
        $region53: #{tpu_custom_call.1} parent=43 // pred_check
          %p1721 = pneg %p173
        $region54: #{tpu_custom_call.1} parent=43 // pred_check_branch
          %1723 = sbr.rel (%p1721) target = $region56
        $region55: #{tpu_custom_call.1} parent=43 // pred_region
          %s1725 = ssub.s32 128, 128
          %1726 = vsyncadd %s1717, %s1725
          %s1727 = smul.addr %s24, 2
          %s1728 = smul.addr %s1727, 64
          %s1729 = scalar_lea.hbm %s6, %s1728
          %s1731 = sshll.u32 %s1720, 4
          %s1732 = int_to_ptr.vmem [resolvable:$true] %s1731
          %1734 = dma.vmem_to_hbm [thread:$0]  %s1732, 128, %s1729, %s1717
        $region56: #{tpu_custom_call.1} parent=43 // pred_fallthru
          _
      $region44: #{tpu_custom_call.1} parent=5 // pred_fallthru
        _
      %p1735 = scmp.le.s32.totalorder 2, %s19
      // Predicated region
      $region57: #{tpu_custom_call.1} parent=5 // pred_check
        %p1736 = pneg %p1735
      $region58: #{tpu_custom_call.1} parent=5 // pred_check_branch
        %1738 = sbr.rel (%p1736) target = $region60
      $region59: #{tpu_custom_call.1} parent=5 // pred_region
        %s1739 = ssub.s32 %s19, 2
        // Predicated region
        $region61: #{tpu_custom_call.1} parent=59 // pred_check
          %p1740 = pneg %p179
        $region62: #{tpu_custom_call.1} parent=59 // pred_check_branch
          %1742 = sbr.rel (%p1740) target = $region64
        $region63: #{tpu_custom_call.1} parent=59 // pred_region
          %s1743 = sand.u32 %s164, 1
          %s1744 = scalar_lea.sflag [#allocation4], %s1743
          %s1745 = sand.u32 %s164, 1
          %s1746 = smul.addr %s1745, 8
          %s1747 = scalar_lea.vmem [#allocation7], %s1746
          %1748 = dma.done %s1744, 128
        $region64: #{tpu_custom_call.1} parent=59 // pred_fallthru
          _
      $region60: #{tpu_custom_call.1} parent=5 // pred_fallthru
        _
    $region6: #{tpu_custom_call.1} parent=1 // loop_footer
      %s23 = sadd.s32 1, %s19
    $region7: #{tpu_custom_call.1} parent=1 // loop_footer_branch
      %18 = sbr.rel target = $region3
    $region8: #{tpu_custom_call.1} parent=1 // loop_exit
      _
    %1749 = vsyncpa [#allocation3], 1
    %s1750 = scalar_lea.sflag [#allocation3], 1
    %1751 = vsyncpa %s1750, 1
    %1752 = vsyncpa [#allocation6], 1
    %1753 = vsyncpa [#allocation4], 1
    %s1754 = scalar_lea.sflag [#allocation4], 1
    %1755 = vsyncpa %s1754, 1

</llo_original>
